<compile_context>
chip_gen: v7x
topology: tpu7x:2x2x1
jax: 0.10.0
libtpu: 0.0.40
codegen_flags: <defaults>
</compile_context>

<pallas_src>
import functools

import numpy as np
import jax
import jax.numpy as jnp
from jax import lax
from jax.experimental import pallas as pl
from jax.experimental.pallas import tpu as pltpu


# ----------------------------------------------------------------------------
# Fused Refine kernel.  Activations live as (C, H*W) f32 values in VMEM/vregs.
# ----------------------------------------------------------------------------
def _refine_kernel(*refs, H, W, Hd, Wd, uh_rows, has_down, mxu_dtype):
    if has_down:
        (fb_ref, fd_ref, uwT_ref,
         wfs_ref, bfs_ref,
         w1f_ref, b1f_ref,
         w2f_ref, b2f_ref,
         w1m_ref, b1m_ref,
         wdn_ref, bdn_ref,
         w2m_ref, b2m_ref,
         o_ref) = refs
    else:
        (fb_ref, fd_ref, uwT_ref,
         wfs_ref, bfs_ref,
         w1f_ref, b1f_ref,
         w2f_ref, b2f_ref,
         w1m_ref, b1m_ref,
         w2m_ref, b2m_ref,
         o_ref) = refs
        wdn_ref = bdn_ref = None

    HW = H * W

    # lane index -> w coordinate, used to mask the horizontal border taps.
    w_lane = lax.broadcasted_iota(jnp.int32, (1, HW), 1) % W
    not_left = w_lane > 0            # reading column w-1 is valid
    not_right = w_lane < (W - 1)     # reading column w+1 is valid

    def conv3x3(x_flat, w_ref, b_ref, relu_in):
        """3x3 conv (stride 1, zero pad 1) on a (Cin, H*W) activation.

        One im2col MXU matmul: (Cout, 9*Cin) @ (9*Cin, H*W), f32 accumulate.
        The 9 taps are static lane-slices of a zero-extended flat activation;
        the W-border wrap-around is masked to zero (== the zero padding).
        """
        cin = x_flat.shape[0]
        x = jnp.maximum(x_flat, 0.0) if relu_in else x_flat
        zpad = jnp.zeros((cin, W + 1), jnp.float32)
        p = jnp.concatenate([zpad, x, zpad], axis=1)        # (cin, HW + 2W + 2)
        taps = []
        for dy in (-1, 0, 1):
            for dx in (-1, 0, 1):
                start = (W + 1) + dy * W + dx               # always >= 0
                t = p[:, start:start + HW]
                if dx == -1:
                    t = jnp.where(not_left, t, 0.0)
                elif dx == 1:
                    t = jnp.where(not_right, t, 0.0)
                taps.append(t)
        im2col = jnp.concatenate(taps, axis=0)              # (9*cin, HW)
        acc = jnp.dot(w_ref[...].astype(mxu_dtype),
                      im2col.astype(mxu_dtype),
                      preferred_element_type=jnp.float32)   # (cout, HW) f32
        return acc + b_ref[...]                             # bias (cout, 1)

    # ---- s = ResFS(convFS(feat_from_backbone)) ----
    fb = fb_ref[0]                                          # (Cin, HW)
    x = conv3x3(fb, wfs_ref, bfs_ref, relu_in=False)
    r = conv3x3(x, w1f_ref, b1f_ref, relu_in=True)
    s = x + conv3x3(r, w2f_ref, b2f_ref, relu_in=True)      # (Chid, HW)

    # ---- m = s + bilinear_x2(feat_from_deeper)  (separable upsample) ----
    fdt = fd_ref[0]                                         # (Hd, Cd, Wd)
    cd = fdt.shape[1]
    # W expansion: a[i*Cd + c, w] = sum_j Uw[w, j] * fd[c, i, j]
    a = jnp.dot(fdt.reshape(Hd * cd, Wd), uwT_ref[...],
                preferred_element_type=jnp.float32)         # (Hd*Cd, W)
    # H expansion: 2-tap lerp with host-constant Uh coefficients.
    rows = []
    for h in range(H):
        acc = None
        for i in range(Hd):
            c = uh_rows[h][i]
            if c != 0.0:
                term = c * a[i * cd:(i + 1) * cd, :]        # (Cd, W)
                acc = term if acc is None else acc + term
        if acc is None:
            acc = jnp.zeros((cd, W), jnp.float32)
        rows.append(acc)
    up = jnp.concatenate(rows, axis=1)                      # (Cd, H*W)
    m = s + up

    # ---- out = ResMM(m) ----
    r2 = conv3x3(m, w1m_ref, b1m_ref, relu_in=True)
    if has_down:
        xd = conv3x3(m, wdn_ref, bdn_ref, relu_in=False)
    else:
        xd = m
    out = xd + conv3x3(r2, w2m_ref, b2m_ref, relu_in=True)  # (Cout, HW)

    o_ref[0] = out.astype(o_ref.dtype)


# ----------------------------------------------------------------------------
# Bilinear x2 interpolation matrix (PyTorch align_corners=False index math).
# ----------------------------------------------------------------------------
def bilinear_upsample_matrix(in_size, scale_factor):
    out_size = int(in_size * scale_factor)
    o = np.arange(out_size, dtype=np.float64)
    src = (o + 0.5) / scale_factor - 0.5
    src = np.maximum(src, 0.0)                      # PyTorch clamps negatives
    i0 = np.minimum(np.floor(src).astype(np.int64), in_size - 1)
    i1 = np.minimum(i0 + 1, in_size - 1)
    lam1 = src - i0
    lam0 = 1.0 - lam1
    M = np.zeros((out_size, in_size), dtype=np.float64)
    M[np.arange(out_size), i0] += lam0
    M[np.arange(out_size), i1] += lam1
    return M.astype(np.float32)


# ----------------------------------------------------------------------------
# Parameter init (PyTorch OIHW shapes) and the Pallas forward wrapper.
# ----------------------------------------------------------------------------
def init_refine_params(key, in_planes, hid_planes, out_planes):
    def conv_init(k, cin, cout):
        kw, kb = jax.random.split(k)
        w = 0.1 * jax.random.normal(kw, (cout, cin, 3, 3), jnp.float32)
        b = 0.1 * jax.random.normal(kb, (cout,), jnp.float32)
        return w, b

    keys = jax.random.split(key, 6)
    params = {
        "convFS": conv_init(keys[0], in_planes, hid_planes),
        "ResFS_conv1": conv_init(keys[1], hid_planes, hid_planes),
        "ResFS_conv2": conv_init(keys[2], hid_planes, hid_planes),
        "ResMM_conv1": conv_init(keys[3], hid_planes, out_planes),
        "ResMM_conv2": conv_init(keys[4], out_planes, out_planes),
    }
    if hid_planes != out_planes:                    # ResBlock downsample branch
        params["ResMM_down"] = conv_init(keys[5], hid_planes, out_planes)
    return params


def refine_forward(params, feat_from_backbone, feat_from_deeper,
                   scale_factor=2, compute_dtype=jnp.bfloat16):
    """feat_from_backbone: (B, Cin, H, W); feat_from_deeper: (B, Chid, Hd, Wd)."""
    fb = feat_from_backbone.astype(jnp.float32)
    fd = feat_from_deeper.astype(jnp.float32)
    B, cin, H, W = fb.shape
    _, cd, Hd, Wd = fd.shape
    assert H == int(Hd * scale_factor) and W == int(Wd * scale_factor)
    HW = H * W

    wfs, bfs = params["convFS"]
    # Pad backbone input channels (and matching weight columns) to a multiple
    # of 8 so every sublane concat inside the kernel is tile aligned.
    cin_p = -(-cin // 8) * 8
    if cin_p != cin:
        fb = jnp.pad(fb, ((0, 0), (0, cin_p - cin), (0, 0), (0, 0)))
        wfs = jnp.pad(wfs, ((0, 0), (0, cin_p - cin), (0, 0), (0, 0)))

    fb_flat = fb.reshape(B, cin_p, HW)              # NCHW with flat spatial
    fd_t = jnp.transpose(fd, (0, 2, 1, 3))          # (B, Hd, Cd, Wd)

    def wflat(w):                                   # OIHW -> (Cout, 9*Cin)
        co, ci = w.shape[0], w.shape[1]
        return jnp.transpose(w, (0, 2, 3, 1)).reshape(co, 9 * ci)

    def bcol(b):
        return b.reshape(-1, 1)                     # (Cout, 1)

    Uh = bilinear_upsample_matrix(Hd, scale_factor)  # (H, Hd) numpy
    Uw = bilinear_upsample_matrix(Wd, scale_factor)  # (W, Wd) numpy
    uwT = jnp.asarray(Uw.T)                          # (Wd, W)
    uh_rows = tuple(tuple(float(v) for v in row) for row in Uh)

    has_down = "ResMM_down" in params
    w1f, b1f = params["ResFS_conv1"]
    w2f, b2f = params["ResFS_conv2"]
    w1m, b1m = params["ResMM_conv1"]
    w2m, b2m = params["ResMM_conv2"]
    out_planes = w1m.shape[0]

    args = [fb_flat, fd_t, uwT,
            wflat(wfs), bcol(bfs),
            wflat(w1f), bcol(b1f),
            wflat(w2f), bcol(b2f),
            wflat(w1m), bcol(b1m)]
    if has_down:
        wdn, bdn = params["ResMM_down"]
        args += [wflat(wdn), bcol(bdn)]
    args += [wflat(w2m), bcol(b2m)]

    def const_spec(arr):                             # resident weight blocks
        nd = arr.ndim
        return pl.BlockSpec(tuple(arr.shape), lambda b, _nd=nd: (0,) * _nd)

    in_specs = [pl.BlockSpec((1, cin_p, HW), lambda b: (b, 0, 0)),
                pl.BlockSpec((1, Hd, cd, Wd), lambda b: (b, 0, 0, 0))]
    in_specs += [const_spec(a) for a in args[2:]]

    kernel = functools.partial(
        _refine_kernel, H=H, W=W, Hd=Hd, Wd=Wd, uh_rows=uh_rows,
        has_down=has_down, mxu_dtype=compute_dtype)

    out_flat = pl.pallas_call(
        kernel,
        out_shape=jax.ShapeDtypeStruct((B, out_planes, HW), jnp.float32),
        grid=(B,),
        in_specs=in_specs,
        out_specs=pl.BlockSpec((1, out_planes, HW), lambda b: (b, 0, 0)),
        compiler_params=pltpu.CompilerParams(
            dimension_semantics=("parallel",)),
    )(*args)

    return out_flat.reshape(B, out_planes, H, W)     # already NCHW


# ----------------------------------------------------------------------------
# Pure-JAX reference (same bf16-operand / f32-accumulate scheme as the kernel).
# ----------------------------------------------------------------------------
def refine_reference(params, fb_nchw, fd_nchw, scale_factor=2,
                     compute_dtype=jnp.bfloat16):
    fb = fb_nchw.astype(jnp.float32)
    fd = fd_nchw.astype(jnp.float32)

    def conv(x, wb, relu_in=False):
        w, b = wb
        xin = jnp.maximum(x, 0.0) if relu_in else x
        y = lax.conv_general_dilated(
            xin.astype(compute_dtype), w.astype(compute_dtype),
            (1, 1), ((1, 1), (1, 1)),
            dimension_numbers=("NCHW", "OIHW", "NCHW"),
            preferred_element_type=jnp.float32)
        return y + b.reshape(1, -1, 1, 1)

    x = conv(fb, params["convFS"])
    r = conv(x, params["ResFS_conv1"], True)
    s = x + conv(r, params["ResFS_conv2"], True)

    Hd, Wd = fd.shape[2], fd.shape[3]
    Uh = jnp.asarray(bilinear_upsample_matrix(Hd, scale_factor))
    Uw = jnp.asarray(bilinear_upsample_matrix(Wd, scale_factor))
    m = s + jnp.einsum("hi,bcij,wj->bchw", Uh, fd, Uw)

    r = conv(m, params["ResMM_conv1"], True)
    xd = conv(m, params["ResMM_down"]) if "ResMM_down" in params else m
    return xd + conv(r, params["ResMM_conv2"], True)


if __name__ == "__main__":
    B = 2
    in_planes, hid_planes, out_planes = 4, 8, 16
    H, W = 16, 16
    scale = 2

    key = jax.random.PRNGKey(0)
    kp, k1, k2 = jax.random.split(key, 3)
    params = init_refine_params(kp, in_planes, hid_planes, out_planes)

    feat_from_backbone = jax.random.normal(k1, (B, in_planes, H, W), jnp.float32)
    feat_from_deeper = jax.random.normal(
        k2, (B, hid_planes, H // scale, W // scale), jnp.float32)

    out = refine_forward(params, feat_from_backbone, feat_from_deeper, scale)
    out = jax.block_until_ready(out)

    assert out.shape == (B, out_planes, H, W)
    assert bool(jnp.all(jnp.isfinite(out)))

    ref = jax.block_until_ready(
        refine_reference(params, feat_from_backbone, feat_from_deeper, scale))
    np.testing.assert_allclose(np.asarray(out), np.asarray(ref),
                               rtol=2e-3, atol=2e-3)

    print("KERNEL_OK")
</pallas_src>

<mosaic_0001>
module attributes {stable_mosaic.version = 11 : i64} {
  func.func @_refine_kernel(%arg0: i32, %arg1: memref<1x8x256xf32, #tpu.memory_space<vmem>>, %arg2: memref<1x8x8x8xf32, #tpu.memory_space<vmem>>, %arg3: memref<8x16xf32, #tpu.memory_space<vmem>>, %arg4: memref<8x72xf32, #tpu.memory_space<vmem>>, %arg5: memref<8x1xf32, #tpu.memory_space<vmem>>, %arg6: memref<8x72xf32, #tpu.memory_space<vmem>>, %arg7: memref<8x1xf32, #tpu.memory_space<vmem>>, %arg8: memref<8x72xf32, #tpu.memory_space<vmem>>, %arg9: memref<8x1xf32, #tpu.memory_space<vmem>>, %arg10: memref<16x72xf32, #tpu.memory_space<vmem>>, %arg11: memref<16x1xf32, #tpu.memory_space<vmem>>, %arg12: memref<16x72xf32, #tpu.memory_space<vmem>>, %arg13: memref<16x1xf32, #tpu.memory_space<vmem>>, %arg14: memref<16x144xf32, #tpu.memory_space<vmem>>, %arg15: memref<16x1xf32, #tpu.memory_space<vmem>>, %arg16: memref<1x16x256xf32, #tpu.memory_space<vmem>>) attributes {dimension_semantics = [#tpu.dimension_semantics<parallel>], iteration_bounds = array<i64: 2>, scalar_prefetch = 0 : i64, scratch_operands = 0 : i64, tpu.core_type = #tpu.core_type<tc>, window_params = [{transform_indices = @transform_0, window_bounds = array<i64: 1, 8, 256>}, {transform_indices = @transform_1, window_bounds = array<i64: 1, 8, 8, 8>}, {pipeline_mode = #tpu.pipeline_mode<synchronous>, transform_indices = @transform_2, window_bounds = array<i64: 8, 16>}, {pipeline_mode = #tpu.pipeline_mode<synchronous>, transform_indices = @transform_3, window_bounds = array<i64: 8, 72>}, {pipeline_mode = #tpu.pipeline_mode<synchronous>, transform_indices = @transform_4, window_bounds = array<i64: 8, 1>}, {pipeline_mode = #tpu.pipeline_mode<synchronous>, transform_indices = @transform_5, window_bounds = array<i64: 8, 72>}, {pipeline_mode = #tpu.pipeline_mode<synchronous>, transform_indices = @transform_6, window_bounds = array<i64: 8, 1>}, {pipeline_mode = #tpu.pipeline_mode<synchronous>, transform_indices = @transform_7, window_bounds = array<i64: 8, 72>}, {pipeline_mode = #tpu.pipeline_mode<synchronous>, transform_indices = @transform_8, window_bounds = array<i64: 8, 1>}, {pipeline_mode = #tpu.pipeline_mode<synchronous>, transform_indices = @transform_9, window_bounds = array<i64: 16, 72>}, {pipeline_mode = #tpu.pipeline_mode<synchronous>, transform_indices = @transform_10, window_bounds = array<i64: 16, 1>}, {pipeline_mode = #tpu.pipeline_mode<synchronous>, transform_indices = @transform_11, window_bounds = array<i64: 16, 72>}, {pipeline_mode = #tpu.pipeline_mode<synchronous>, transform_indices = @transform_12, window_bounds = array<i64: 16, 1>}, {pipeline_mode = #tpu.pipeline_mode<synchronous>, transform_indices = @transform_13, window_bounds = array<i64: 16, 144>}, {pipeline_mode = #tpu.pipeline_mode<synchronous>, transform_indices = @transform_14, window_bounds = array<i64: 16, 1>}, {transform_indices = @transform_15, window_bounds = array<i64: 1, 16, 256>}]} {
    %0 = tpu.iota {dimensions = array<i32: 1>} : vector<1x256xi32>
    %c16_i32 = arith.constant 16 : i32
    %c0_i32 = arith.constant 0 : i32
    %1 = arith.cmpi eq, %c16_i32, %c0_i32 : i32
    %c1_i32 = arith.constant 1 : i32
    %2 = arith.select %1, %c1_i32, %c16_i32 : i32
    %3 = vector.broadcast %2 : i32 to vector<1x256xi32>
    %4 = arith.remsi %0, %3 : vector<1x256xi32>
    %c0_i32_0 = arith.constant 0 : i32
    %5 = vector.broadcast %c0_i32_0 : i32 to vector<1x256xi32>
    %6 = arith.cmpi ne, %4, %5 : vector<1x256xi32>
    %c0_i32_1 = arith.constant 0 : i32
    %7 = vector.broadcast %c0_i32_1 : i32 to vector<1x256xi32>
    %8 = arith.cmpi slt, %4, %7 : vector<1x256xi32>
    %c0_i32_2 = arith.constant 0 : i32
    %9 = arith.cmpi slt, %2, %c0_i32_2 : i32
    %10 = vector.broadcast %9 : i1 to vector<1x256xi1>
    %11 = vector.broadcast %10 : vector<1x256xi1> to vector<1x256xi1>
    %12 = arith.xori %8, %11 : vector<1x256xi1>
    %13 = arith.andi %12, %6 : vector<1x256xi1>
    %14 = vector.broadcast %2 : i32 to vector<1x256xi32>
    %15 = arith.addi %4, %14 : vector<1x256xi32>
    %16 = arith.select %13, %15, %4 : vector<1x256xi1>, vector<1x256xi32>
    %c0_i32_3 = arith.constant 0 : i32
    %17 = vector.broadcast %c0_i32_3 : i32 to vector<1x256xi32>
    %18 = arith.cmpi sgt, %16, %17 : vector<1x256xi32>
    %c15_i32 = arith.constant 15 : i32
    %19 = vector.broadcast %c15_i32 : i32 to vector<1x256xi32>
    %20 = arith.cmpi slt, %16, %19 : vector<1x256xi32>
    %c0 = arith.constant 0 : index
    %c0_4 = arith.constant 0 : index
    %c0_5 = arith.constant 0 : index
    %21 = vector.load %arg1[%c0, %c0_4, %c0_5] : memref<1x8x256xf32, #tpu.memory_space<vmem>>, vector<1x8x256xf32>
    %22 = vector.shape_cast %21 : vector<1x8x256xf32> to vector<8x256xf32>
    %cst = arith.constant 0.000000e+00 : f32
    %23 = vector.broadcast %cst : f32 to vector<8x17xf32>
    %24 = tpu.concatenate %23, %22, %23 in 1 : vector<8x17xf32>, vector<8x256xf32>, vector<8x17xf32> -> vector<8x290xf32>
    %25 = vector.extract_strided_slice %24 {offsets = [0, 0], sizes = [8, 256], strides = [1, 1]} : vector<8x290xf32> to vector<8x256xf32>
    %cst_6 = arith.constant 0.000000e+00 : f32
    %26 = vector.shape_cast %18 : vector<1x256xi1> to vector<1x256xi1>
    %27 = vector.broadcast %26 : vector<1x256xi1> to vector<8x256xi1>
    %28 = vector.broadcast %cst_6 : f32 to vector<8x256xf32>
    %29 = arith.select %27, %25, %28 : vector<8x256xi1>, vector<8x256xf32>
    %30 = vector.extract_strided_slice %24 {offsets = [0, 1], sizes = [8, 256], strides = [1, 1]} : vector<8x290xf32> to vector<8x256xf32>
    %31 = vector.extract_strided_slice %24 {offsets = [0, 2], sizes = [8, 256], strides = [1, 1]} : vector<8x290xf32> to vector<8x256xf32>
    %cst_7 = arith.constant 0.000000e+00 : f32
    %32 = vector.shape_cast %20 : vector<1x256xi1> to vector<1x256xi1>
    %33 = vector.broadcast %32 : vector<1x256xi1> to vector<8x256xi1>
    %34 = vector.broadcast %cst_7 : f32 to vector<8x256xf32>
    %35 = arith.select %33, %31, %34 : vector<8x256xi1>, vector<8x256xf32>
    %36 = vector.extract_strided_slice %24 {offsets = [0, 16], sizes = [8, 256], strides = [1, 1]} : vector<8x290xf32> to vector<8x256xf32>
    %cst_8 = arith.constant 0.000000e+00 : f32
    %37 = vector.shape_cast %18 : vector<1x256xi1> to vector<1x256xi1>
    %38 = vector.broadcast %37 : vector<1x256xi1> to vector<8x256xi1>
    %39 = vector.broadcast %cst_8 : f32 to vector<8x256xf32>
    %40 = arith.select %38, %36, %39 : vector<8x256xi1>, vector<8x256xf32>
    %41 = vector.extract_strided_slice %24 {offsets = [0, 17], sizes = [8, 256], strides = [1, 1]} : vector<8x290xf32> to vector<8x256xf32>
    %42 = vector.extract_strided_slice %24 {offsets = [0, 18], sizes = [8, 256], strides = [1, 1]} : vector<8x290xf32> to vector<8x256xf32>
    %cst_9 = arith.constant 0.000000e+00 : f32
    %43 = vector.shape_cast %20 : vector<1x256xi1> to vector<1x256xi1>
    %44 = vector.broadcast %43 : vector<1x256xi1> to vector<8x256xi1>
    %45 = vector.broadcast %cst_9 : f32 to vector<8x256xf32>
    %46 = arith.select %44, %42, %45 : vector<8x256xi1>, vector<8x256xf32>
    %47 = vector.extract_strided_slice %24 {offsets = [0, 32], sizes = [8, 256], strides = [1, 1]} : vector<8x290xf32> to vector<8x256xf32>
    %cst_10 = arith.constant 0.000000e+00 : f32
    %48 = vector.shape_cast %18 : vector<1x256xi1> to vector<1x256xi1>
    %49 = vector.broadcast %48 : vector<1x256xi1> to vector<8x256xi1>
    %50 = vector.broadcast %cst_10 : f32 to vector<8x256xf32>
    %51 = arith.select %49, %47, %50 : vector<8x256xi1>, vector<8x256xf32>
    %52 = vector.extract_strided_slice %24 {offsets = [0, 33], sizes = [8, 256], strides = [1, 1]} : vector<8x290xf32> to vector<8x256xf32>
    %53 = vector.extract_strided_slice %24 {offsets = [0, 34], sizes = [8, 256], strides = [1, 1]} : vector<8x290xf32> to vector<8x256xf32>
    %cst_11 = arith.constant 0.000000e+00 : f32
    %54 = vector.shape_cast %20 : vector<1x256xi1> to vector<1x256xi1>
    %55 = vector.broadcast %54 : vector<1x256xi1> to vector<8x256xi1>
    %56 = vector.broadcast %cst_11 : f32 to vector<8x256xf32>
    %57 = arith.select %55, %53, %56 : vector<8x256xi1>, vector<8x256xf32>
    %58 = tpu.concatenate %29, %30, %35, %40, %41, %46, %51, %52, %57 in 0 : vector<8x256xf32>, vector<8x256xf32>, vector<8x256xf32>, vector<8x256xf32>, vector<8x256xf32>, vector<8x256xf32>, vector<8x256xf32>, vector<8x256xf32>, vector<8x256xf32> -> vector<72x256xf32>
    %c0_12 = arith.constant 0 : index
    %c0_13 = arith.constant 0 : index
    %59 = vector.load %arg4[%c0_12, %c0_13] : memref<8x72xf32, #tpu.memory_space<vmem>>, vector<8x72xf32>
    %60 = arith.truncf %59 : vector<8x72xf32> to vector<8x72xbf16>
    %61 = arith.truncf %58 : vector<72x256xf32> to vector<72x256xbf16>
    %cst_14 = arith.constant dense<0.000000e+00> : vector<8x256xf32>
    %62 = tpu.matmul %60, %61, %cst_14 {dimension_numbers = #tpu.dot_dimension_numbers<[1], [0], [0], [1], [0, 0, 1, 1], [], []>} : vector<8x72xbf16>, vector<72x256xbf16>, vector<8x256xf32> -> vector<8x256xf32>
    %c0_15 = arith.constant 0 : index
    %c0_16 = arith.constant 0 : index
    %63 = vector.load %arg5[%c0_15, %c0_16] : memref<8x1xf32, #tpu.memory_space<vmem>>, vector<8x1xf32>
    %64 = vector.broadcast %63 : vector<8x1xf32> to vector<8x256xf32>
    %65 = arith.addf %62, %64 : vector<8x256xf32>
    %cst_17 = arith.constant 0.000000e+00 : f32
    %66 = vector.broadcast %cst_17 : f32 to vector<8x256xf32>
    %67 = arith.maximumf %65, %66 : vector<8x256xf32>
    %cst_18 = arith.constant 0.000000e+00 : f32
    %68 = vector.broadcast %cst_18 : f32 to vector<8x17xf32>
    %69 = tpu.concatenate %68, %67, %68 in 1 : vector<8x17xf32>, vector<8x256xf32>, vector<8x17xf32> -> vector<8x290xf32>
    %70 = vector.extract_strided_slice %69 {offsets = [0, 0], sizes = [8, 256], strides = [1, 1]} : vector<8x290xf32> to vector<8x256xf32>
    %cst_19 = arith.constant 0.000000e+00 : f32
    %71 = vector.shape_cast %18 : vector<1x256xi1> to vector<1x256xi1>
    %72 = vector.broadcast %71 : vector<1x256xi1> to vector<8x256xi1>
    %73 = vector.broadcast %cst_19 : f32 to vector<8x256xf32>
    %74 = arith.select %72, %70, %73 : vector<8x256xi1>, vector<8x256xf32>
    %75 = vector.extract_strided_slice %69 {offsets = [0, 1], sizes = [8, 256], strides = [1, 1]} : vector<8x290xf32> to vector<8x256xf32>
    %76 = vector.extract_strided_slice %69 {offsets = [0, 2], sizes = [8, 256], strides = [1, 1]} : vector<8x290xf32> to vector<8x256xf32>
    %cst_20 = arith.constant 0.000000e+00 : f32
    %77 = vector.shape_cast %20 : vector<1x256xi1> to vector<1x256xi1>
    %78 = vector.broadcast %77 : vector<1x256xi1> to vector<8x256xi1>
    %79 = vector.broadcast %cst_20 : f32 to vector<8x256xf32>
    %80 = arith.select %78, %76, %79 : vector<8x256xi1>, vector<8x256xf32>
    %81 = vector.extract_strided_slice %69 {offsets = [0, 16], sizes = [8, 256], strides = [1, 1]} : vector<8x290xf32> to vector<8x256xf32>
    %cst_21 = arith.constant 0.000000e+00 : f32
    %82 = vector.shape_cast %18 : vector<1x256xi1> to vector<1x256xi1>
    %83 = vector.broadcast %82 : vector<1x256xi1> to vector<8x256xi1>
    %84 = vector.broadcast %cst_21 : f32 to vector<8x256xf32>
    %85 = arith.select %83, %81, %84 : vector<8x256xi1>, vector<8x256xf32>
    %86 = vector.extract_strided_slice %69 {offsets = [0, 17], sizes = [8, 256], strides = [1, 1]} : vector<8x290xf32> to vector<8x256xf32>
    %87 = vector.extract_strided_slice %69 {offsets = [0, 18], sizes = [8, 256], strides = [1, 1]} : vector<8x290xf32> to vector<8x256xf32>
    %cst_22 = arith.constant 0.000000e+00 : f32
    %88 = vector.shape_cast %20 : vector<1x256xi1> to vector<1x256xi1>
    %89 = vector.broadcast %88 : vector<1x256xi1> to vector<8x256xi1>
    %90 = vector.broadcast %cst_22 : f32 to vector<8x256xf32>
    %91 = arith.select %89, %87, %90 : vector<8x256xi1>, vector<8x256xf32>
    %92 = vector.extract_strided_slice %69 {offsets = [0, 32], sizes = [8, 256], strides = [1, 1]} : vector<8x290xf32> to vector<8x256xf32>
    %cst_23 = arith.constant 0.000000e+00 : f32
    %93 = vector.shape_cast %18 : vector<1x256xi1> to vector<1x256xi1>
    %94 = vector.broadcast %93 : vector<1x256xi1> to vector<8x256xi1>
    %95 = vector.broadcast %cst_23 : f32 to vector<8x256xf32>
    %96 = arith.select %94, %92, %95 : vector<8x256xi1>, vector<8x256xf32>
    %97 = vector.extract_strided_slice %69 {offsets = [0, 33], sizes = [8, 256], strides = [1, 1]} : vector<8x290xf32> to vector<8x256xf32>
    %98 = vector.extract_strided_slice %69 {offsets = [0, 34], sizes = [8, 256], strides = [1, 1]} : vector<8x290xf32> to vector<8x256xf32>
    %cst_24 = arith.constant 0.000000e+00 : f32
    %99 = vector.shape_cast %20 : vector<1x256xi1> to vector<1x256xi1>
    %100 = vector.broadcast %99 : vector<1x256xi1> to vector<8x256xi1>
    %101 = vector.broadcast %cst_24 : f32 to vector<8x256xf32>
    %102 = arith.select %100, %98, %101 : vector<8x256xi1>, vector<8x256xf32>
    %103 = tpu.concatenate %74, %75, %80, %85, %86, %91, %96, %97, %102 in 0 : vector<8x256xf32>, vector<8x256xf32>, vector<8x256xf32>, vector<8x256xf32>, vector<8x256xf32>, vector<8x256xf32>, vector<8x256xf32>, vector<8x256xf32>, vector<8x256xf32> -> vector<72x256xf32>
    %c0_25 = arith.constant 0 : index
    %c0_26 = arith.constant 0 : index
    %104 = vector.load %arg6[%c0_25, %c0_26] : memref<8x72xf32, #tpu.memory_space<vmem>>, vector<8x72xf32>
    %105 = arith.truncf %104 : vector<8x72xf32> to vector<8x72xbf16>
    %106 = arith.truncf %103 : vector<72x256xf32> to vector<72x256xbf16>
    %cst_27 = arith.constant dense<0.000000e+00> : vector<8x256xf32>
    %107 = tpu.matmul %105, %106, %cst_27 {dimension_numbers = #tpu.dot_dimension_numbers<[1], [0], [0], [1], [0, 0, 1, 1], [], []>} : vector<8x72xbf16>, vector<72x256xbf16>, vector<8x256xf32> -> vector<8x256xf32>
    %c0_28 = arith.constant 0 : index
    %c0_29 = arith.constant 0 : index
    %108 = vector.load %arg7[%c0_28, %c0_29] : memref<8x1xf32, #tpu.memory_space<vmem>>, vector<8x1xf32>
    %109 = vector.broadcast %108 : vector<8x1xf32> to vector<8x256xf32>
    %110 = arith.addf %107, %109 : vector<8x256xf32>
    %cst_30 = arith.constant 0.000000e+00 : f32
    %111 = vector.broadcast %cst_30 : f32 to vector<8x256xf32>
    %112 = arith.maximumf %110, %111 : vector<8x256xf32>
    %cst_31 = arith.constant 0.000000e+00 : f32
    %113 = vector.broadcast %cst_31 : f32 to vector<8x17xf32>
    %114 = tpu.concatenate %113, %112, %113 in 1 : vector<8x17xf32>, vector<8x256xf32>, vector<8x17xf32> -> vector<8x290xf32>
    %115 = vector.extract_strided_slice %114 {offsets = [0, 0], sizes = [8, 256], strides = [1, 1]} : vector<8x290xf32> to vector<8x256xf32>
    %cst_32 = arith.constant 0.000000e+00 : f32
    %116 = vector.shape_cast %18 : vector<1x256xi1> to vector<1x256xi1>
    %117 = vector.broadcast %116 : vector<1x256xi1> to vector<8x256xi1>
    %118 = vector.broadcast %cst_32 : f32 to vector<8x256xf32>
    %119 = arith.select %117, %115, %118 : vector<8x256xi1>, vector<8x256xf32>
    %120 = vector.extract_strided_slice %114 {offsets = [0, 1], sizes = [8, 256], strides = [1, 1]} : vector<8x290xf32> to vector<8x256xf32>
    %121 = vector.extract_strided_slice %114 {offsets = [0, 2], sizes = [8, 256], strides = [1, 1]} : vector<8x290xf32> to vector<8x256xf32>
    %cst_33 = arith.constant 0.000000e+00 : f32
    %122 = vector.shape_cast %20 : vector<1x256xi1> to vector<1x256xi1>
    %123 = vector.broadcast %122 : vector<1x256xi1> to vector<8x256xi1>
    %124 = vector.broadcast %cst_33 : f32 to vector<8x256xf32>
    %125 = arith.select %123, %121, %124 : vector<8x256xi1>, vector<8x256xf32>
    %126 = vector.extract_strided_slice %114 {offsets = [0, 16], sizes = [8, 256], strides = [1, 1]} : vector<8x290xf32> to vector<8x256xf32>
    %cst_34 = arith.constant 0.000000e+00 : f32
    %127 = vector.shape_cast %18 : vector<1x256xi1> to vector<1x256xi1>
    %128 = vector.broadcast %127 : vector<1x256xi1> to vector<8x256xi1>
    %129 = vector.broadcast %cst_34 : f32 to vector<8x256xf32>
    %130 = arith.select %128, %126, %129 : vector<8x256xi1>, vector<8x256xf32>
    %131 = vector.extract_strided_slice %114 {offsets = [0, 17], sizes = [8, 256], strides = [1, 1]} : vector<8x290xf32> to vector<8x256xf32>
    %132 = vector.extract_strided_slice %114 {offsets = [0, 18], sizes = [8, 256], strides = [1, 1]} : vector<8x290xf32> to vector<8x256xf32>
    %cst_35 = arith.constant 0.000000e+00 : f32
    %133 = vector.shape_cast %20 : vector<1x256xi1> to vector<1x256xi1>
    %134 = vector.broadcast %133 : vector<1x256xi1> to vector<8x256xi1>
    %135 = vector.broadcast %cst_35 : f32 to vector<8x256xf32>
    %136 = arith.select %134, %132, %135 : vector<8x256xi1>, vector<8x256xf32>
    %137 = vector.extract_strided_slice %114 {offsets = [0, 32], sizes = [8, 256], strides = [1, 1]} : vector<8x290xf32> to vector<8x256xf32>
    %cst_36 = arith.constant 0.000000e+00 : f32
    %138 = vector.shape_cast %18 : vector<1x256xi1> to vector<1x256xi1>
    %139 = vector.broadcast %138 : vector<1x256xi1> to vector<8x256xi1>
    %140 = vector.broadcast %cst_36 : f32 to vector<8x256xf32>
    %141 = arith.select %139, %137, %140 : vector<8x256xi1>, vector<8x256xf32>
    %142 = vector.extract_strided_slice %114 {offsets = [0, 33], sizes = [8, 256], strides = [1, 1]} : vector<8x290xf32> to vector<8x256xf32>
    %143 = vector.extract_strided_slice %114 {offsets = [0, 34], sizes = [8, 256], strides = [1, 1]} : vector<8x290xf32> to vector<8x256xf32>
    %cst_37 = arith.constant 0.000000e+00 : f32
    %144 = vector.shape_cast %20 : vector<1x256xi1> to vector<1x256xi1>
    %145 = vector.broadcast %144 : vector<1x256xi1> to vector<8x256xi1>
    %146 = vector.broadcast %cst_37 : f32 to vector<8x256xf32>
    %147 = arith.select %145, %143, %146 : vector<8x256xi1>, vector<8x256xf32>
    %148 = tpu.concatenate %119, %120, %125, %130, %131, %136, %141, %142, %147 in 0 : vector<8x256xf32>, vector<8x256xf32>, vector<8x256xf32>, vector<8x256xf32>, vector<8x256xf32>, vector<8x256xf32>, vector<8x256xf32>, vector<8x256xf32>, vector<8x256xf32> -> vector<72x256xf32>
    %c0_38 = arith.constant 0 : index
    %c0_39 = arith.constant 0 : index
    %149 = vector.load %arg8[%c0_38, %c0_39] : memref<8x72xf32, #tpu.memory_space<vmem>>, vector<8x72xf32>
    %150 = arith.truncf %149 : vector<8x72xf32> to vector<8x72xbf16>
    %151 = arith.truncf %148 : vector<72x256xf32> to vector<72x256xbf16>
    %cst_40 = arith.constant dense<0.000000e+00> : vector<8x256xf32>
    %152 = tpu.matmul %150, %151, %cst_40 {dimension_numbers = #tpu.dot_dimension_numbers<[1], [0], [0], [1], [0, 0, 1, 1], [], []>} : vector<8x72xbf16>, vector<72x256xbf16>, vector<8x256xf32> -> vector<8x256xf32>
    %c0_41 = arith.constant 0 : index
    %c0_42 = arith.constant 0 : index
    %153 = vector.load %arg9[%c0_41, %c0_42] : memref<8x1xf32, #tpu.memory_space<vmem>>, vector<8x1xf32>
    %154 = vector.broadcast %153 : vector<8x1xf32> to vector<8x256xf32>
    %155 = arith.addf %152, %154 : vector<8x256xf32>
    %156 = arith.addf %65, %155 : vector<8x256xf32>
    %c0_43 = arith.constant 0 : index
    %c0_44 = arith.constant 0 : index
    %c0_45 = arith.constant 0 : index
    %c0_46 = arith.constant 0 : index
    %157 = vector.load %arg2[%c0_43, %c0_44, %c0_45, %c0_46] : memref<1x8x8x8xf32, #tpu.memory_space<vmem>>, vector<1x8x8x8xf32>
    %158 = vector.shape_cast %157 : vector<1x8x8x8xf32> to vector<8x8x8xf32>
    %159 = vector.shape_cast %158 : vector<8x8x8xf32> to vector<64x8xf32>
    %c0_47 = arith.constant 0 : index
    %c0_48 = arith.constant 0 : index
    %160 = vector.load %arg3[%c0_47, %c0_48] : memref<8x16xf32, #tpu.memory_space<vmem>>, vector<8x16xf32>
    %cst_49 = arith.constant dense<0.000000e+00> : vector<64x16xf32>
    %161 = tpu.matmul %159, %160, %cst_49 {dimension_numbers = #tpu.dot_dimension_numbers<[1], [0], [0], [1], [0, 0, 1, 1], [], []>} : vector<64x8xf32>, vector<8x16xf32>, vector<64x16xf32> -> vector<64x16xf32>
    %162 = vector.extract_strided_slice %161 {offsets = [0, 0], sizes = [8, 16], strides = [1, 1]} : vector<64x16xf32> to vector<8x16xf32>
    %cst_50 = arith.constant 1.000000e+00 : f32
    %163 = vector.broadcast %cst_50 : f32 to vector<8x16xf32>
    %164 = arith.mulf %163, %162 : vector<8x16xf32>
    %165 = vector.extract_strided_slice %161 {offsets = [0, 0], sizes = [8, 16], strides = [1, 1]} : vector<64x16xf32> to vector<8x16xf32>
    %cst_51 = arith.constant 7.500000e-01 : f32
    %166 = vector.broadcast %cst_51 : f32 to vector<8x16xf32>
    %167 = arith.mulf %166, %165 : vector<8x16xf32>
    %168 = vector.extract_strided_slice %161 {offsets = [8, 0], sizes = [8, 16], strides = [1, 1]} : vector<64x16xf32> to vector<8x16xf32>
    %cst_52 = arith.constant 2.500000e-01 : f32
    %169 = vector.broadcast %cst_52 : f32 to vector<8x16xf32>
    %170 = arith.mulf %169, %168 : vector<8x16xf32>
    %171 = arith.addf %167, %170 : vector<8x16xf32>
    %172 = vector.extract_strided_slice %161 {offsets = [0, 0], sizes = [8, 16], strides = [1, 1]} : vector<64x16xf32> to vector<8x16xf32>
    %cst_53 = arith.constant 2.500000e-01 : f32
    %173 = vector.broadcast %cst_53 : f32 to vector<8x16xf32>
    %174 = arith.mulf %173, %172 : vector<8x16xf32>
    %175 = vector.extract_strided_slice %161 {offsets = [8, 0], sizes = [8, 16], strides = [1, 1]} : vector<64x16xf32> to vector<8x16xf32>
    %cst_54 = arith.constant 7.500000e-01 : f32
    %176 = vector.broadcast %cst_54 : f32 to vector<8x16xf32>
    %177 = arith.mulf %176, %175 : vector<8x16xf32>
    %178 = arith.addf %174, %177 : vector<8x16xf32>
    %179 = vector.extract_strided_slice %161 {offsets = [8, 0], sizes = [8, 16], strides = [1, 1]} : vector<64x16xf32> to vector<8x16xf32>
    %cst_55 = arith.constant 7.500000e-01 : f32
    %180 = vector.broadcast %cst_55 : f32 to vector<8x16xf32>
    %181 = arith.mulf %180, %179 : vector<8x16xf32>
    %182 = vector.extract_strided_slice %161 {offsets = [16, 0], sizes = [8, 16], strides = [1, 1]} : vector<64x16xf32> to vector<8x16xf32>
    %cst_56 = arith.constant 2.500000e-01 : f32
    %183 = vector.broadcast %cst_56 : f32 to vector<8x16xf32>
    %184 = arith.mulf %183, %182 : vector<8x16xf32>
    %185 = arith.addf %181, %184 : vector<8x16xf32>
    %186 = vector.extract_strided_slice %161 {offsets = [8, 0], sizes = [8, 16], strides = [1, 1]} : vector<64x16xf32> to vector<8x16xf32>
    %cst_57 = arith.constant 2.500000e-01 : f32
    %187 = vector.broadcast %cst_57 : f32 to vector<8x16xf32>
    %188 = arith.mulf %187, %186 : vector<8x16xf32>
    %189 = vector.extract_strided_slice %161 {offsets = [16, 0], sizes = [8, 16], strides = [1, 1]} : vector<64x16xf32> to vector<8x16xf32>
    %cst_58 = arith.constant 7.500000e-01 : f32
    %190 = vector.broadcast %cst_58 : f32 to vector<8x16xf32>
    %191 = arith.mulf %190, %189 : vector<8x16xf32>
    %192 = arith.addf %188, %191 : vector<8x16xf32>
    %193 = vector.extract_strided_slice %161 {offsets = [16, 0], sizes = [8, 16], strides = [1, 1]} : vector<64x16xf32> to vector<8x16xf32>
    %cst_59 = arith.constant 7.500000e-01 : f32
    %194 = vector.broadcast %cst_59 : f32 to vector<8x16xf32>
    %195 = arith.mulf %194, %193 : vector<8x16xf32>
    %196 = vector.extract_strided_slice %161 {offsets = [24, 0], sizes = [8, 16], strides = [1, 1]} : vector<64x16xf32> to vector<8x16xf32>
    %cst_60 = arith.constant 2.500000e-01 : f32
    %197 = vector.broadcast %cst_60 : f32 to vector<8x16xf32>
    %198 = arith.mulf %197, %196 : vector<8x16xf32>
    %199 = arith.addf %195, %198 : vector<8x16xf32>
    %200 = vector.extract_strided_slice %161 {offsets = [16, 0], sizes = [8, 16], strides = [1, 1]} : vector<64x16xf32> to vector<8x16xf32>
    %cst_61 = arith.constant 2.500000e-01 : f32
    %201 = vector.broadcast %cst_61 : f32 to vector<8x16xf32>
    %202 = arith.mulf %201, %200 : vector<8x16xf32>
    %203 = vector.extract_strided_slice %161 {offsets = [24, 0], sizes = [8, 16], strides = [1, 1]} : vector<64x16xf32> to vector<8x16xf32>
    %cst_62 = arith.constant 7.500000e-01 : f32
    %204 = vector.broadcast %cst_62 : f32 to vector<8x16xf32>
    %205 = arith.mulf %204, %203 : vector<8x16xf32>
    %206 = arith.addf %202, %205 : vector<8x16xf32>
    %207 = vector.extract_strided_slice %161 {offsets = [24, 0], sizes = [8, 16], strides = [1, 1]} : vector<64x16xf32> to vector<8x16xf32>
    %cst_63 = arith.constant 7.500000e-01 : f32
    %208 = vector.broadcast %cst_63 : f32 to vector<8x16xf32>
    %209 = arith.mulf %208, %207 : vector<8x16xf32>
    %210 = vector.extract_strided_slice %161 {offsets = [32, 0], sizes = [8, 16], strides = [1, 1]} : vector<64x16xf32> to vector<8x16xf32>
    %cst_64 = arith.constant 2.500000e-01 : f32
    %211 = vector.broadcast %cst_64 : f32 to vector<8x16xf32>
    %212 = arith.mulf %211, %210 : vector<8x16xf32>
    %213 = arith.addf %209, %212 : vector<8x16xf32>
    %214 = vector.extract_strided_slice %161 {offsets = [24, 0], sizes = [8, 16], strides = [1, 1]} : vector<64x16xf32> to vector<8x16xf32>
    %cst_65 = arith.constant 2.500000e-01 : f32
    %215 = vector.broadcast %cst_65 : f32 to vector<8x16xf32>
    %216 = arith.mulf %215, %214 : vector<8x16xf32>
    %217 = vector.extract_strided_slice %161 {offsets = [32, 0], sizes = [8, 16], strides = [1, 1]} : vector<64x16xf32> to vector<8x16xf32>
    %cst_66 = arith.constant 7.500000e-01 : f32
    %218 = vector.broadcast %cst_66 : f32 to vector<8x16xf32>
    %219 = arith.mulf %218, %217 : vector<8x16xf32>
    %220 = arith.addf %216, %219 : vector<8x16xf32>
    %221 = vector.extract_strided_slice %161 {offsets = [32, 0], sizes = [8, 16], strides = [1, 1]} : vector<64x16xf32> to vector<8x16xf32>
    %cst_67 = arith.constant 7.500000e-01 : f32
    %222 = vector.broadcast %cst_67 : f32 to vector<8x16xf32>
    %223 = arith.mulf %222, %221 : vector<8x16xf32>
    %224 = vector.extract_strided_slice %161 {offsets = [40, 0], sizes = [8, 16], strides = [1, 1]} : vector<64x16xf32> to vector<8x16xf32>
    %cst_68 = arith.constant 2.500000e-01 : f32
    %225 = vector.broadcast %cst_68 : f32 to vector<8x16xf32>
    %226 = arith.mulf %225, %224 : vector<8x16xf32>
    %227 = arith.addf %223, %226 : vector<8x16xf32>
    %228 = vector.extract_strided_slice %161 {offsets = [32, 0], sizes = [8, 16], strides = [1, 1]} : vector<64x16xf32> to vector<8x16xf32>
    %cst_69 = arith.constant 2.500000e-01 : f32
    %229 = vector.broadcast %cst_69 : f32 to vector<8x16xf32>
    %230 = arith.mulf %229, %228 : vector<8x16xf32>
    %231 = vector.extract_strided_slice %161 {offsets = [40, 0], sizes = [8, 16], strides = [1, 1]} : vector<64x16xf32> to vector<8x16xf32>
    %cst_70 = arith.constant 7.500000e-01 : f32
    %232 = vector.broadcast %cst_70 : f32 to vector<8x16xf32>
    %233 = arith.mulf %232, %231 : vector<8x16xf32>
    %234 = arith.addf %230, %233 : vector<8x16xf32>
    %235 = vector.extract_strided_slice %161 {offsets = [40, 0], sizes = [8, 16], strides = [1, 1]} : vector<64x16xf32> to vector<8x16xf32>
    %cst_71 = arith.constant 7.500000e-01 : f32
    %236 = vector.broadcast %cst_71 : f32 to vector<8x16xf32>
    %237 = arith.mulf %236, %235 : vector<8x16xf32>
    %238 = vector.extract_strided_slice %161 {offsets = [48, 0], sizes = [8, 16], strides = [1, 1]} : vector<64x16xf32> to vector<8x16xf32>
    %cst_72 = arith.constant 2.500000e-01 : f32
    %239 = vector.broadcast %cst_72 : f32 to vector<8x16xf32>
    %240 = arith.mulf %239, %238 : vector<8x16xf32>
    %241 = arith.addf %237, %240 : vector<8x16xf32>
    %242 = vector.extract_strided_slice %161 {offsets = [40, 0], sizes = [8, 16], strides = [1, 1]} : vector<64x16xf32> to vector<8x16xf32>
    %cst_73 = arith.constant 2.500000e-01 : f32
    %243 = vector.broadcast %cst_73 : f32 to vector<8x16xf32>
    %244 = arith.mulf %243, %242 : vector<8x16xf32>
    %245 = vector.extract_strided_slice %161 {offsets = [48, 0], sizes = [8, 16], strides = [1, 1]} : vector<64x16xf32> to vector<8x16xf32>
    %cst_74 = arith.constant 7.500000e-01 : f32
    %246 = vector.broadcast %cst_74 : f32 to vector<8x16xf32>
    %247 = arith.mulf %246, %245 : vector<8x16xf32>
    %248 = arith.addf %244, %247 : vector<8x16xf32>
    %249 = vector.extract_strided_slice %161 {offsets = [48, 0], sizes = [8, 16], strides = [1, 1]} : vector<64x16xf32> to vector<8x16xf32>
    %cst_75 = arith.constant 7.500000e-01 : f32
    %250 = vector.broadcast %cst_75 : f32 to vector<8x16xf32>
    %251 = arith.mulf %250, %249 : vector<8x16xf32>
    %252 = vector.extract_strided_slice %161 {offsets = [56, 0], sizes = [8, 16], strides = [1, 1]} : vector<64x16xf32> to vector<8x16xf32>
    %cst_76 = arith.constant 2.500000e-01 : f32
    %253 = vector.broadcast %cst_76 : f32 to vector<8x16xf32>
    %254 = arith.mulf %253, %252 : vector<8x16xf32>
    %255 = arith.addf %251, %254 : vector<8x16xf32>
    %256 = vector.extract_strided_slice %161 {offsets = [48, 0], sizes = [8, 16], strides = [1, 1]} : vector<64x16xf32> to vector<8x16xf32>
    %cst_77 = arith.constant 2.500000e-01 : f32
    %257 = vector.broadcast %cst_77 : f32 to vector<8x16xf32>
    %258 = arith.mulf %257, %256 : vector<8x16xf32>
    %259 = vector.extract_strided_slice %161 {offsets = [56, 0], sizes = [8, 16], strides = [1, 1]} : vector<64x16xf32> to vector<8x16xf32>
    %cst_78 = arith.constant 7.500000e-01 : f32
    %260 = vector.broadcast %cst_78 : f32 to vector<8x16xf32>
    %261 = arith.mulf %260, %259 : vector<8x16xf32>
    %262 = arith.addf %258, %261 : vector<8x16xf32>
    %263 = vector.extract_strided_slice %161 {offsets = [56, 0], sizes = [8, 16], strides = [1, 1]} : vector<64x16xf32> to vector<8x16xf32>
    %cst_79 = arith.constant 1.000000e+00 : f32
    %264 = vector.broadcast %cst_79 : f32 to vector<8x16xf32>
    %265 = arith.mulf %264, %263 : vector<8x16xf32>
    %266 = tpu.concatenate %164, %171, %178, %185, %192, %199, %206, %213, %220, %227, %234, %241, %248, %255, %262, %265 in 1 : vector<8x16xf32>, vector<8x16xf32>, vector<8x16xf32>, vector<8x16xf32>, vector<8x16xf32>, vector<8x16xf32>, vector<8x16xf32>, vector<8x16xf32>, vector<8x16xf32>, vector<8x16xf32>, vector<8x16xf32>, vector<8x16xf32>, vector<8x16xf32>, vector<8x16xf32>, vector<8x16xf32>, vector<8x16xf32> -> vector<8x256xf32>
    %267 = arith.addf %156, %266 : vector<8x256xf32>
    %cst_80 = arith.constant 0.000000e+00 : f32
    %268 = vector.broadcast %cst_80 : f32 to vector<8x256xf32>
    %269 = arith.maximumf %267, %268 : vector<8x256xf32>
    %cst_81 = arith.constant 0.000000e+00 : f32
    %270 = vector.broadcast %cst_81 : f32 to vector<8x17xf32>
    %271 = tpu.concatenate %270, %269, %270 in 1 : vector<8x17xf32>, vector<8x256xf32>, vector<8x17xf32> -> vector<8x290xf32>
    %272 = vector.extract_strided_slice %271 {offsets = [0, 0], sizes = [8, 256], strides = [1, 1]} : vector<8x290xf32> to vector<8x256xf32>
    %cst_82 = arith.constant 0.000000e+00 : f32
    %273 = vector.shape_cast %18 : vector<1x256xi1> to vector<1x256xi1>
    %274 = vector.broadcast %273 : vector<1x256xi1> to vector<8x256xi1>
    %275 = vector.broadcast %cst_82 : f32 to vector<8x256xf32>
    %276 = arith.select %274, %272, %275 : vector<8x256xi1>, vector<8x256xf32>
    %277 = vector.extract_strided_slice %271 {offsets = [0, 1], sizes = [8, 256], strides = [1, 1]} : vector<8x290xf32> to vector<8x256xf32>
    %278 = vector.extract_strided_slice %271 {offsets = [0, 2], sizes = [8, 256], strides = [1, 1]} : vector<8x290xf32> to vector<8x256xf32>
    %cst_83 = arith.constant 0.000000e+00 : f32
    %279 = vector.shape_cast %20 : vector<1x256xi1> to vector<1x256xi1>
    %280 = vector.broadcast %279 : vector<1x256xi1> to vector<8x256xi1>
    %281 = vector.broadcast %cst_83 : f32 to vector<8x256xf32>
    %282 = arith.select %280, %278, %281 : vector<8x256xi1>, vector<8x256xf32>
    %283 = vector.extract_strided_slice %271 {offsets = [0, 16], sizes = [8, 256], strides = [1, 1]} : vector<8x290xf32> to vector<8x256xf32>
    %cst_84 = arith.constant 0.000000e+00 : f32
    %284 = vector.shape_cast %18 : vector<1x256xi1> to vector<1x256xi1>
    %285 = vector.broadcast %284 : vector<1x256xi1> to vector<8x256xi1>
    %286 = vector.broadcast %cst_84 : f32 to vector<8x256xf32>
    %287 = arith.select %285, %283, %286 : vector<8x256xi1>, vector<8x256xf32>
    %288 = vector.extract_strided_slice %271 {offsets = [0, 17], sizes = [8, 256], strides = [1, 1]} : vector<8x290xf32> to vector<8x256xf32>
    %289 = vector.extract_strided_slice %271 {offsets = [0, 18], sizes = [8, 256], strides = [1, 1]} : vector<8x290xf32> to vector<8x256xf32>
    %cst_85 = arith.constant 0.000000e+00 : f32
    %290 = vector.shape_cast %20 : vector<1x256xi1> to vector<1x256xi1>
    %291 = vector.broadcast %290 : vector<1x256xi1> to vector<8x256xi1>
    %292 = vector.broadcast %cst_85 : f32 to vector<8x256xf32>
    %293 = arith.select %291, %289, %292 : vector<8x256xi1>, vector<8x256xf32>
    %294 = vector.extract_strided_slice %271 {offsets = [0, 32], sizes = [8, 256], strides = [1, 1]} : vector<8x290xf32> to vector<8x256xf32>
    %cst_86 = arith.constant 0.000000e+00 : f32
    %295 = vector.shape_cast %18 : vector<1x256xi1> to vector<1x256xi1>
    %296 = vector.broadcast %295 : vector<1x256xi1> to vector<8x256xi1>
    %297 = vector.broadcast %cst_86 : f32 to vector<8x256xf32>
    %298 = arith.select %296, %294, %297 : vector<8x256xi1>, vector<8x256xf32>
    %299 = vector.extract_strided_slice %271 {offsets = [0, 33], sizes = [8, 256], strides = [1, 1]} : vector<8x290xf32> to vector<8x256xf32>
    %300 = vector.extract_strided_slice %271 {offsets = [0, 34], sizes = [8, 256], strides = [1, 1]} : vector<8x290xf32> to vector<8x256xf32>
    %cst_87 = arith.constant 0.000000e+00 : f32
    %301 = vector.shape_cast %20 : vector<1x256xi1> to vector<1x256xi1>
    %302 = vector.broadcast %301 : vector<1x256xi1> to vector<8x256xi1>
    %303 = vector.broadcast %cst_87 : f32 to vector<8x256xf32>
    %304 = arith.select %302, %300, %303 : vector<8x256xi1>, vector<8x256xf32>
    %305 = tpu.concatenate %276, %277, %282, %287, %288, %293, %298, %299, %304 in 0 : vector<8x256xf32>, vector<8x256xf32>, vector<8x256xf32>, vector<8x256xf32>, vector<8x256xf32>, vector<8x256xf32>, vector<8x256xf32>, vector<8x256xf32>, vector<8x256xf32> -> vector<72x256xf32>
    %c0_88 = arith.constant 0 : index
    %c0_89 = arith.constant 0 : index
    %306 = vector.load %arg10[%c0_88, %c0_89] : memref<16x72xf32, #tpu.memory_space<vmem>>, vector<16x72xf32>
    %307 = arith.truncf %306 : vector<16x72xf32> to vector<16x72xbf16>
    %308 = arith.truncf %305 : vector<72x256xf32> to vector<72x256xbf16>
    %cst_90 = arith.constant dense<0.000000e+00> : vector<16x256xf32>
    %309 = tpu.matmul %307, %308, %cst_90 {dimension_numbers = #tpu.dot_dimension_numbers<[1], [0], [0], [1], [0, 0, 1, 1], [], []>} : vector<16x72xbf16>, vector<72x256xbf16>, vector<16x256xf32> -> vector<16x256xf32>
    %c0_91 = arith.constant 0 : index
    %c0_92 = arith.constant 0 : index
    %310 = vector.load %arg11[%c0_91, %c0_92] : memref<16x1xf32, #tpu.memory_space<vmem>>, vector<16x1xf32>
    %311 = vector.broadcast %310 : vector<16x1xf32> to vector<16x256xf32>
    %312 = arith.addf %309, %311 : vector<16x256xf32>
    %cst_93 = arith.constant 0.000000e+00 : f32
    %313 = vector.broadcast %cst_93 : f32 to vector<8x17xf32>
    %314 = tpu.concatenate %313, %267, %313 in 1 : vector<8x17xf32>, vector<8x256xf32>, vector<8x17xf32> -> vector<8x290xf32>
    %315 = vector.extract_strided_slice %314 {offsets = [0, 0], sizes = [8, 256], strides = [1, 1]} : vector<8x290xf32> to vector<8x256xf32>
    %cst_94 = arith.constant 0.000000e+00 : f32
    %316 = vector.shape_cast %18 : vector<1x256xi1> to vector<1x256xi1>
    %317 = vector.broadcast %316 : vector<1x256xi1> to vector<8x256xi1>
    %318 = vector.broadcast %cst_94 : f32 to vector<8x256xf32>
    %319 = arith.select %317, %315, %318 : vector<8x256xi1>, vector<8x256xf32>
    %320 = vector.extract_strided_slice %314 {offsets = [0, 1], sizes = [8, 256], strides = [1, 1]} : vector<8x290xf32> to vector<8x256xf32>
    %321 = vector.extract_strided_slice %314 {offsets = [0, 2], sizes = [8, 256], strides = [1, 1]} : vector<8x290xf32> to vector<8x256xf32>
    %cst_95 = arith.constant 0.000000e+00 : f32
    %322 = vector.shape_cast %20 : vector<1x256xi1> to vector<1x256xi1>
    %323 = vector.broadcast %322 : vector<1x256xi1> to vector<8x256xi1>
    %324 = vector.broadcast %cst_95 : f32 to vector<8x256xf32>
    %325 = arith.select %323, %321, %324 : vector<8x256xi1>, vector<8x256xf32>
    %326 = vector.extract_strided_slice %314 {offsets = [0, 16], sizes = [8, 256], strides = [1, 1]} : vector<8x290xf32> to vector<8x256xf32>
    %cst_96 = arith.constant 0.000000e+00 : f32
    %327 = vector.shape_cast %18 : vector<1x256xi1> to vector<1x256xi1>
    %328 = vector.broadcast %327 : vector<1x256xi1> to vector<8x256xi1>
    %329 = vector.broadcast %cst_96 : f32 to vector<8x256xf32>
    %330 = arith.select %328, %326, %329 : vector<8x256xi1>, vector<8x256xf32>
    %331 = vector.extract_strided_slice %314 {offsets = [0, 17], sizes = [8, 256], strides = [1, 1]} : vector<8x290xf32> to vector<8x256xf32>
    %332 = vector.extract_strided_slice %314 {offsets = [0, 18], sizes = [8, 256], strides = [1, 1]} : vector<8x290xf32> to vector<8x256xf32>
    %cst_97 = arith.constant 0.000000e+00 : f32
    %333 = vector.shape_cast %20 : vector<1x256xi1> to vector<1x256xi1>
    %334 = vector.broadcast %333 : vector<1x256xi1> to vector<8x256xi1>
    %335 = vector.broadcast %cst_97 : f32 to vector<8x256xf32>
    %336 = arith.select %334, %332, %335 : vector<8x256xi1>, vector<8x256xf32>
    %337 = vector.extract_strided_slice %314 {offsets = [0, 32], sizes = [8, 256], strides = [1, 1]} : vector<8x290xf32> to vector<8x256xf32>
    %cst_98 = arith.constant 0.000000e+00 : f32
    %338 = vector.shape_cast %18 : vector<1x256xi1> to vector<1x256xi1>
    %339 = vector.broadcast %338 : vector<1x256xi1> to vector<8x256xi1>
    %340 = vector.broadcast %cst_98 : f32 to vector<8x256xf32>
    %341 = arith.select %339, %337, %340 : vector<8x256xi1>, vector<8x256xf32>
    %342 = vector.extract_strided_slice %314 {offsets = [0, 33], sizes = [8, 256], strides = [1, 1]} : vector<8x290xf32> to vector<8x256xf32>
    %343 = vector.extract_strided_slice %314 {offsets = [0, 34], sizes = [8, 256], strides = [1, 1]} : vector<8x290xf32> to vector<8x256xf32>
    %cst_99 = arith.constant 0.000000e+00 : f32
    %344 = vector.shape_cast %20 : vector<1x256xi1> to vector<1x256xi1>
    %345 = vector.broadcast %344 : vector<1x256xi1> to vector<8x256xi1>
    %346 = vector.broadcast %cst_99 : f32 to vector<8x256xf32>
    %347 = arith.select %345, %343, %346 : vector<8x256xi1>, vector<8x256xf32>
    %348 = tpu.concatenate %319, %320, %325, %330, %331, %336, %341, %342, %347 in 0 : vector<8x256xf32>, vector<8x256xf32>, vector<8x256xf32>, vector<8x256xf32>, vector<8x256xf32>, vector<8x256xf32>, vector<8x256xf32>, vector<8x256xf32>, vector<8x256xf32> -> vector<72x256xf32>
    %c0_100 = arith.constant 0 : index
    %c0_101 = arith.constant 0 : index
    %349 = vector.load %arg12[%c0_100, %c0_101] : memref<16x72xf32, #tpu.memory_space<vmem>>, vector<16x72xf32>
    %350 = arith.truncf %349 : vector<16x72xf32> to vector<16x72xbf16>
    %351 = arith.truncf %348 : vector<72x256xf32> to vector<72x256xbf16>
    %cst_102 = arith.constant dense<0.000000e+00> : vector<16x256xf32>
    %352 = tpu.matmul %350, %351, %cst_102 {dimension_numbers = #tpu.dot_dimension_numbers<[1], [0], [0], [1], [0, 0, 1, 1], [], []>} : vector<16x72xbf16>, vector<72x256xbf16>, vector<16x256xf32> -> vector<16x256xf32>
    %c0_103 = arith.constant 0 : index
    %c0_104 = arith.constant 0 : index
    %353 = vector.load %arg13[%c0_103, %c0_104] : memref<16x1xf32, #tpu.memory_space<vmem>>, vector<16x1xf32>
    %354 = vector.broadcast %353 : vector<16x1xf32> to vector<16x256xf32>
    %355 = arith.addf %352, %354 : vector<16x256xf32>
    %cst_105 = arith.constant 0.000000e+00 : f32
    %356 = vector.broadcast %cst_105 : f32 to vector<16x256xf32>
    %357 = arith.maximumf %312, %356 : vector<16x256xf32>
    %cst_106 = arith.constant 0.000000e+00 : f32
    %358 = vector.broadcast %cst_106 : f32 to vector<16x17xf32>
    %359 = tpu.concatenate %358, %357, %358 in 1 : vector<16x17xf32>, vector<16x256xf32>, vector<16x17xf32> -> vector<16x290xf32>
    %360 = vector.extract_strided_slice %359 {offsets = [0, 0], sizes = [16, 256], strides = [1, 1]} : vector<16x290xf32> to vector<16x256xf32>
    %cst_107 = arith.constant 0.000000e+00 : f32
    %361 = vector.shape_cast %18 : vector<1x256xi1> to vector<1x256xi1>
    %362 = vector.broadcast %361 : vector<1x256xi1> to vector<16x256xi1>
    %363 = vector.broadcast %cst_107 : f32 to vector<16x256xf32>
    %364 = arith.select %362, %360, %363 : vector<16x256xi1>, vector<16x256xf32>
    %365 = vector.extract_strided_slice %359 {offsets = [0, 1], sizes = [16, 256], strides = [1, 1]} : vector<16x290xf32> to vector<16x256xf32>
    %366 = vector.extract_strided_slice %359 {offsets = [0, 2], sizes = [16, 256], strides = [1, 1]} : vector<16x290xf32> to vector<16x256xf32>
    %cst_108 = arith.constant 0.000000e+00 : f32
    %367 = vector.shape_cast %20 : vector<1x256xi1> to vector<1x256xi1>
    %368 = vector.broadcast %367 : vector<1x256xi1> to vector<16x256xi1>
    %369 = vector.broadcast %cst_108 : f32 to vector<16x256xf32>
    %370 = arith.select %368, %366, %369 : vector<16x256xi1>, vector<16x256xf32>
    %371 = vector.extract_strided_slice %359 {offsets = [0, 16], sizes = [16, 256], strides = [1, 1]} : vector<16x290xf32> to vector<16x256xf32>
    %cst_109 = arith.constant 0.000000e+00 : f32
    %372 = vector.shape_cast %18 : vector<1x256xi1> to vector<1x256xi1>
    %373 = vector.broadcast %372 : vector<1x256xi1> to vector<16x256xi1>
    %374 = vector.broadcast %cst_109 : f32 to vector<16x256xf32>
    %375 = arith.select %373, %371, %374 : vector<16x256xi1>, vector<16x256xf32>
    %376 = vector.extract_strided_slice %359 {offsets = [0, 17], sizes = [16, 256], strides = [1, 1]} : vector<16x290xf32> to vector<16x256xf32>
    %377 = vector.extract_strided_slice %359 {offsets = [0, 18], sizes = [16, 256], strides = [1, 1]} : vector<16x290xf32> to vector<16x256xf32>
    %cst_110 = arith.constant 0.000000e+00 : f32
    %378 = vector.shape_cast %20 : vector<1x256xi1> to vector<1x256xi1>
    %379 = vector.broadcast %378 : vector<1x256xi1> to vector<16x256xi1>
    %380 = vector.broadcast %cst_110 : f32 to vector<16x256xf32>
    %381 = arith.select %379, %377, %380 : vector<16x256xi1>, vector<16x256xf32>
    %382 = vector.extract_strided_slice %359 {offsets = [0, 32], sizes = [16, 256], strides = [1, 1]} : vector<16x290xf32> to vector<16x256xf32>
    %cst_111 = arith.constant 0.000000e+00 : f32
    %383 = vector.shape_cast %18 : vector<1x256xi1> to vector<1x256xi1>
    %384 = vector.broadcast %383 : vector<1x256xi1> to vector<16x256xi1>
    %385 = vector.broadcast %cst_111 : f32 to vector<16x256xf32>
    %386 = arith.select %384, %382, %385 : vector<16x256xi1>, vector<16x256xf32>
    %387 = vector.extract_strided_slice %359 {offsets = [0, 33], sizes = [16, 256], strides = [1, 1]} : vector<16x290xf32> to vector<16x256xf32>
    %388 = vector.extract_strided_slice %359 {offsets = [0, 34], sizes = [16, 256], strides = [1, 1]} : vector<16x290xf32> to vector<16x256xf32>
    %cst_112 = arith.constant 0.000000e+00 : f32
    %389 = vector.shape_cast %20 : vector<1x256xi1> to vector<1x256xi1>
    %390 = vector.broadcast %389 : vector<1x256xi1> to vector<16x256xi1>
    %391 = vector.broadcast %cst_112 : f32 to vector<16x256xf32>
    %392 = arith.select %390, %388, %391 : vector<16x256xi1>, vector<16x256xf32>
    %393 = tpu.concatenate %364, %365, %370, %375, %376, %381, %386, %387, %392 in 0 : vector<16x256xf32>, vector<16x256xf32>, vector<16x256xf32>, vector<16x256xf32>, vector<16x256xf32>, vector<16x256xf32>, vector<16x256xf32>, vector<16x256xf32>, vector<16x256xf32> -> vector<144x256xf32>
    %c0_113 = arith.constant 0 : index
    %c0_114 = arith.constant 0 : index
    %394 = vector.load %arg14[%c0_113, %c0_114] : memref<16x144xf32, #tpu.memory_space<vmem>>, vector<16x144xf32>
    %395 = arith.truncf %394 : vector<16x144xf32> to vector<16x144xbf16>
    %396 = arith.truncf %393 : vector<144x256xf32> to vector<144x256xbf16>
    %cst_115 = arith.constant dense<0.000000e+00> : vector<16x256xf32>
    %397 = tpu.matmul %395, %396, %cst_115 {dimension_numbers = #tpu.dot_dimension_numbers<[1], [0], [0], [1], [0, 0, 1, 1], [], []>} : vector<16x144xbf16>, vector<144x256xbf16>, vector<16x256xf32> -> vector<16x256xf32>
    %c0_116 = arith.constant 0 : index
    %c0_117 = arith.constant 0 : index
    %398 = vector.load %arg15[%c0_116, %c0_117] : memref<16x1xf32, #tpu.memory_space<vmem>>, vector<16x1xf32>
    %399 = vector.broadcast %398 : vector<16x1xf32> to vector<16x256xf32>
    %400 = arith.addf %397, %399 : vector<16x256xf32>
    %401 = arith.addf %355, %400 : vector<16x256xf32>
    %c0_118 = arith.constant 0 : index
    %c0_119 = arith.constant 0 : index
    %c0_120 = arith.constant 0 : index
    %402 = vector.load %arg16[%c0_118, %c0_119, %c0_120] : memref<1x16x256xf32, #tpu.memory_space<vmem>>, vector<1x16x256xf32>
    %403 = vector.shape_cast %402 : vector<1x16x256xf32> to vector<16x256xf32>
    %404 = vector.shape_cast %401 : vector<16x256xf32> to vector<1x16x256xf32>
    tpu.vector_store %arg16[%c0_118, %c0_119, %c0_120], %404 {strides = array<i32>} : memref<1x16x256xf32, #tpu.memory_space<vmem>>, vector<1x16x256xf32>,
    return
  }
  func.func @transform_0(%arg0: i32) -> (i32, i32, i32) {
    %c0_i32 = arith.constant 0 : i32
    %c0_i32_0 = arith.constant 0 : i32
    %c0_i32_1 = arith.constant 0 : i32
    return %arg0, %c0_i32, %c0_i32_0 : i32, i32, i32
  }
  func.func @transform_1(%arg0: i32) -> (i32, i32, i32, i32) {
    %c0_i32 = arith.constant 0 : i32
    %c0_i32_0 = arith.constant 0 : i32
    %c0_i32_1 = arith.constant 0 : i32
    %c0_i32_2 = arith.constant 0 : i32
    return %arg0, %c0_i32, %c0_i32_0, %c0_i32_1 : i32, i32, i32, i32
  }
  func.func @transform_2(%arg0: i32) -> (i32, i32) {
    %c0_i32 = arith.constant 0 : i32
    %c0_i32_0 = arith.constant 0 : i32
    %c0_i32_1 = arith.constant 0 : i32
    return %c0_i32, %c0_i32_0 : i32, i32
  }
  func.func @transform_3(%arg0: i32) -> (i32, i32) {
    %c0_i32 = arith.constant 0 : i32
    %c0_i32_0 = arith.constant 0 : i32
    %c0_i32_1 = arith.constant 0 : i32
    return %c0_i32, %c0_i32_0 : i32, i32
  }
  func.func @transform_4(%arg0: i32) -> (i32, i32) {
    %c0_i32 = arith.constant 0 : i32
    %c0_i32_0 = arith.constant 0 : i32
    %c0_i32_1 = arith.constant 0 : i32
    return %c0_i32, %c0_i32_0 : i32, i32
  }
  func.func @transform_5(%arg0: i32) -> (i32, i32) {
    %c0_i32 = arith.constant 0 : i32
    %c0_i32_0 = arith.constant 0 : i32
    %c0_i32_1 = arith.constant 0 : i32
    return %c0_i32, %c0_i32_0 : i32, i32
  }
  func.func @transform_6(%arg0: i32) -> (i32, i32) {
    %c0_i32 = arith.constant 0 : i32
    %c0_i32_0 = arith.constant 0 : i32
    %c0_i32_1 = arith.constant 0 : i32
    return %c0_i32, %c0_i32_0 : i32, i32
  }
  func.func @transform_7(%arg0: i32) -> (i32, i32) {
    %c0_i32 = arith.constant 0 : i32
    %c0_i32_0 = arith.constant 0 : i32
    %c0_i32_1 = arith.constant 0 : i32
    return %c0_i32, %c0_i32_0 : i32, i32
  }
  func.func @transform_8(%arg0: i32) -> (i32, i32) {
    %c0_i32 = arith.constant 0 : i32
    %c0_i32_0 = arith.constant 0 : i32
    %c0_i32_1 = arith.constant 0 : i32
    return %c0_i32, %c0_i32_0 : i32, i32
  }
  func.func @transform_9(%arg0: i32) -> (i32, i32) {
    %c0_i32 = arith.constant 0 : i32
    %c0_i32_0 = arith.constant 0 : i32
    %c0_i32_1 = arith.constant 0 : i32
    return %c0_i32, %c0_i32_0 : i32, i32
  }
  func.func @transform_10(%arg0: i32) -> (i32, i32) {
    %c0_i32 = arith.constant 0 : i32
    %c0_i32_0 = arith.constant 0 : i32
    %c0_i32_1 = arith.constant 0 : i32
    return %c0_i32, %c0_i32_0 : i32, i32
  }
  func.func @transform_11(%arg0: i32) -> (i32, i32) {
    %c0_i32 = arith.constant 0 : i32
    %c0_i32_0 = arith.constant 0 : i32
    %c0_i32_1 = arith.constant 0 : i32
    return %c0_i32, %c0_i32_0 : i32, i32
  }
  func.func @transform_12(%arg0: i32) -> (i32, i32) {
    %c0_i32 = arith.constant 0 : i32
    %c0_i32_0 = arith.constant 0 : i32
    %c0_i32_1 = arith.constant 0 : i32
    return %c0_i32, %c0_i32_0 : i32, i32
  }
  func.func @transform_13(%arg0: i32) -> (i32, i32) {
    %c0_i32 = arith.constant 0 : i32
    %c0_i32_0 = arith.constant 0 : i32
    %c0_i32_1 = arith.constant 0 : i32
    return %c0_i32, %c0_i32_0 : i32, i32
  }
  func.func @transform_14(%arg0: i32) -> (i32, i32) {
    %c0_i32 = arith.constant 0 : i32
    %c0_i32_0 = arith.constant 0 : i32
    %c0_i32_1 = arith.constant 0 : i32
    return %c0_i32, %c0_i32_0 : i32, i32
  }
  func.func @transform_15(%arg0: i32) -> (i32, i32, i32) {
    %c0_i32 = arith.constant 0 : i32
    %c0_i32_0 = arith.constant 0 : i32
    %c0_i32_1 = arith.constant 0 : i32
    return %arg0, %c0_i32, %c0_i32_0 : i32, i32, i32
  }
}

</mosaic_0001>

<llo_original>
// kernel: tpu_custom_call.1
$region0: #{tpu_custom_call.1}
  #allocation0 [shape = 'u32[]', space=smem, size = 0x4, offset = 0x4, fixed_abs, tag = 'smem constant byte address 0x4 - core index']
  #allocation1 [shape = 'u32[144,128]{1,0:T(1,128)}', space=vmem, size = 0x12000, scoped, tag = 'internal scratch']
  %s0 = inlined_call_operand.vmem [shape: f32[2,8,256], index: 0, kind: input, shape index: {}]
  %s1 = inlined_call_operand.hbm [shape: f32[2,8,8,8], index: 1, kind: input, shape index: {}]
  %s2 = inlined_call_operand.hbm [shape: f32[8,16], index: 2, kind: input, shape index: {}]
  %s3 = inlined_call_operand.hbm [shape: f32[8,72], index: 3, kind: input, shape index: {}]
  %s4 = inlined_call_operand.vmem [shape: f32[8,1], index: 4, kind: input, shape index: {}]
  %s5 = inlined_call_operand.hbm [shape: f32[8,72], index: 5, kind: input, shape index: {}]
  %s6 = inlined_call_operand.vmem [shape: f32[8,1], index: 6, kind: input, shape index: {}]
  %s7 = inlined_call_operand.vmem [shape: f32[8,72], index: 7, kind: input, shape index: {}]
  %s8 = inlined_call_operand.vmem [shape: f32[8,1], index: 8, kind: input, shape index: {}]
  %s9 = inlined_call_operand.vmem [shape: f32[16,72], index: 9, kind: input, shape index: {}]
  %s10 = inlined_call_operand.vmem [shape: f32[16,1], index: 10, kind: input, shape index: {}]
  %s11 = inlined_call_operand.vmem [shape: f32[16,72], index: 11, kind: input, shape index: {}]
  %s12 = inlined_call_operand.vmem [shape: f32[16,1], index: 12, kind: input, shape index: {}]
  %s13 = inlined_call_operand.vmem [shape: f32[16,144], index: 13, kind: input, shape index: {}]
  %s14 = inlined_call_operand.vmem [shape: f32[16,1], index: 14, kind: input, shape index: {}]
  %s15 = inlined_call_operand.hbm [shape: f32[2,16,256], index: 15, kind: output, shape index: {}]
  %s16 = sld [smem:[#allocation0]]
  $region109: #{tpu_custom_call.1} parent=0
    _
  %s18 = ssub.s32 1, %s16
  %s19 = scalar_select 0, %s18, %s16
  $region1: #{tpu_custom_call.1} parent=0
    #allocation2 [shape = 'u8[65536]{0}', space=vmem, size = 0x10000, scoped, tag = 'input window, operand 1']
    #allocation3 [shape = 's32[2]{0}', space=sflag, size = 0x8, scoped, tag = 'scoped memory for tpu_custom_call.1']
    #allocation4 [shape = 's32[2]{0}', space=sflag, size = 0x8, scoped, tag = 'scoped memory for tpu_custom_call.1']
    #allocation5 [shape = 'u8[4096]{0}', space=vmem, size = 0x1000, scoped, tag = 'input window, operand 2, single buffered']
    #allocation6 [shape = 's32[1]{0}', space=sflag, size = 0x4, scoped, tag = 'scoped memory for tpu_custom_call.1']
    #allocation7 [shape = 'u8[4096]{0}', space=vmem, size = 0x1000, scoped, tag = 'input window, operand 3, single buffered']
    #allocation8 [shape = 'u8[4096]{0}', space=vmem, size = 0x1000, scoped, tag = 'input window, operand 5, single buffered']
    #allocation9 [shape = 's32[1]{0}', space=sflag, size = 0x4, scoped, tag = 'scoped memory for tpu_custom_call.1']
    #allocation10 [shape = 'u8[32768]{0}', space=vmem, size = 0x8000, scoped, tag = 'output window, operand 0']
    %20 = vsyncpa [#allocation3], 0
    %s21 = scalar_lea.sflag [#allocation3], 1
    %22 = vsyncpa %s21, 0
    %23 = vsyncpa [#allocation6], 0
    %24 = vsyncpa [#allocation9], 0
    %25 = vsyncpa [#allocation4], 0
    %s26 = scalar_lea.sflag [#allocation4], 1
    %27 = vsyncpa %s26, 0
    loop: start=0, step=1, limit=4
    $region2: #{tpu_custom_call.1} parent=1 // loop_pre_header
      _
    $region3: #{tpu_custom_call.1} parent=1 // loop_header
      %s29 = sphi 0, %s33
      %p30 = scmp.ge.s32.totalorder %s29, 4
      %s39 = sphi 0, %s41
      %s42 = sphi 0, %s39
      %s43 = sphi 0, %s42
      %s59 = sphi 0, %s43
      %s65 = sphi 0, %s67
      %s68 = sphi 0, %s65
      %s69 = sphi 0, %s68
      %s85 = sphi 0, %s69
      %s89 = sphi 0, %s89
      %s91 = sphi 0, %s89
      %s92 = sphi 0, %s91
      %s106 = sphi 0, %s92
      %s110 = sphi 0, %s110
      %s112 = sphi 0, %s110
      %s113 = sphi 0, %s112
      %s127 = sphi 0, %s113
      %s131 = sphi 0, %s131
      %s133 = sphi 0, %s131
      %s134 = sphi 0, %s133
      %s148 = sphi 0, %s134
      %s152 = sphi 0, %s152
      %s154 = sphi 0, %s152
      %s155 = sphi 0, %s154
      %s169 = sphi 0, %s155
      %s173 = sphi 0, %s173
      %s175 = sphi 0, %s173
      %s176 = sphi 0, %s175
      %s190 = sphi 0, %s176
      %s194 = sphi 0, %s194
      %s196 = sphi 0, %s194
      %s197 = sphi 0, %s196
      %s211 = sphi 0, %s197
      %s215 = sphi 0, %s215
      %s217 = sphi 0, %s215
      %s218 = sphi 0, %s217
      %s232 = sphi 0, %s218
      %s236 = sphi 0, %s236
      %s238 = sphi 0, %s236
      %s239 = sphi 0, %s238
      %s253 = sphi 0, %s239
      %s257 = sphi 0, %s257
      %s259 = sphi 0, %s257
      %s260 = sphi 0, %s259
      %s274 = sphi 0, %s260
      %s278 = sphi 0, %s278
      %s280 = sphi 0, %s278
      %s281 = sphi 0, %s280
      %s295 = sphi 0, %s281
      %s299 = sphi 0, %s299
      %s301 = sphi 0, %s299
      %s302 = sphi 0, %s301
      %s316 = sphi 0, %s302
      %s320 = sphi 0, %s320
      %s322 = sphi 0, %s320
      %s323 = sphi 0, %s322
      %s337 = sphi 0, %s323
      %s341 = sphi 0, %s341
      %s343 = sphi 0, %s341
      %s344 = sphi 0, %s343
      %s358 = sphi 0, %s344
      %s364 = sphi 0, %s366
      %s367 = sphi 0, %s364
      %s368 = sphi 0, %s367
      %s384 = sphi 0, %s368
    $region4: #{tpu_custom_call.1} parent=1 // loop_header_branch
      %32 = sbr.rel (%p30) target = $region8
    $region5: #{tpu_custom_call.1} parent=1 // loop_body
      %s34 = ssub.s32 %s29, 1
      %s35 = ssub.s32 %s29, 2
      %s36 = sadd.s32 %s29, 1
      %s37 = ssub.s32 %s29, %s36
      %p38 = scmp.eq.s32.totalorder %s37, 0
      %s40 = sadd.s32 %s39, 1
      %s41 = scalar_select %p38, %s39, %s40
      %p44 = pneg %p38
      %p45 = scmp.eq.s32.totalorder %s29, 1
      %p46 = por %p44, %p45
      %p47 = scmp.ne.s32.totalorder %s39, %s42
      %p48 = scmp.eq.s32.totalorder %s29, 0
      %p49 = por %p47, %p48
      %p50 = scmp.ne.s32.totalorder %s39, %s42
      %p51 = scmp.eq.s32.totalorder %s34, 1
      %p52 = por %p50, %p51
      %p53 = scmp.ne.s32.totalorder %s42, %s43
      %p54 = scmp.eq.s32.totalorder %s34, 0
      %p55 = por %p53, %p54
      %p56 = scmp.ne.s32.totalorder %s42, %s43
      %p57 = scmp.eq.s32.totalorder %s35, 1
      %p58 = por %p56, %p57
      %p60 = scmp.ne.s32.totalorder %s43, %s59
      %p61 = scmp.eq.s32.totalorder %s35, 0
      %p62 = por %p60, %p61
      %s63 = ssub.s32 %s29, %s36
      %p64 = scmp.eq.s32.totalorder %s63, 0
      %s66 = sadd.s32 %s65, 1
      %s67 = scalar_select %p64, %s65, %s66
      %p70 = pneg %p64
      %p71 = scmp.eq.s32.totalorder %s29, 1
      %p72 = por %p70, %p71
      %p73 = scmp.ne.s32.totalorder %s65, %s68
      %p74 = scmp.eq.s32.totalorder %s29, 0
      %p75 = por %p73, %p74
      %p76 = scmp.ne.s32.totalorder %s65, %s68
      %p77 = scmp.eq.s32.totalorder %s34, 1
      %p78 = por %p76, %p77
      %p79 = scmp.ne.s32.totalorder %s68, %s69
      %p80 = scmp.eq.s32.totalorder %s34, 0
      %p81 = por %p79, %p80
      %p82 = scmp.ne.s32.totalorder %s68, %s69
      %p83 = scmp.eq.s32.totalorder %s35, 1
      %p84 = por %p82, %p83
      %p86 = scmp.ne.s32.totalorder %s69, %s85
      %p87 = scmp.eq.s32.totalorder %s35, 0
      %p88 = por %p86, %p87
      %s90 = sadd.s32 %s89, 1
      %p93 = scmp.eq.s32.totalorder %s29, 1
      %p94 = scmp.ne.s32.totalorder %s89, %s91
      %p95 = scmp.eq.s32.totalorder %s29, 0
      %p96 = por %p94, %p95
      %p97 = scmp.ne.s32.totalorder %s89, %s91
      %p98 = scmp.eq.s32.totalorder %s34, 1
      %p99 = por %p97, %p98
      %p100 = scmp.ne.s32.totalorder %s91, %s92
      %p101 = scmp.eq.s32.totalorder %s34, 0
      %p102 = por %p100, %p101
      %p103 = scmp.ne.s32.totalorder %s91, %s92
      %p104 = scmp.eq.s32.totalorder %s35, 1
      %p105 = por %p103, %p104
      %p107 = scmp.ne.s32.totalorder %s92, %s106
      %p108 = scmp.eq.s32.totalorder %s35, 0
      %p109 = por %p107, %p108
      %s111 = sadd.s32 %s110, 1
      %p114 = scmp.eq.s32.totalorder %s29, 1
      %p115 = scmp.ne.s32.totalorder %s110, %s112
      %p116 = scmp.eq.s32.totalorder %s29, 0
      %p117 = por %p115, %p116
      %p118 = scmp.ne.s32.totalorder %s110, %s112
      %p119 = scmp.eq.s32.totalorder %s34, 1
      %p120 = por %p118, %p119
      %p121 = scmp.ne.s32.totalorder %s112, %s113
      %p122 = scmp.eq.s32.totalorder %s34, 0
      %p123 = por %p121, %p122
      %p124 = scmp.ne.s32.totalorder %s112, %s113
      %p125 = scmp.eq.s32.totalorder %s35, 1
      %p126 = por %p124, %p125
      %p128 = scmp.ne.s32.totalorder %s113, %s127
      %p129 = scmp.eq.s32.totalorder %s35, 0
      %p130 = por %p128, %p129
      %s132 = sadd.s32 %s131, 1
      %p135 = scmp.eq.s32.totalorder %s29, 1
      %p136 = scmp.ne.s32.totalorder %s131, %s133
      %p137 = scmp.eq.s32.totalorder %s29, 0
      %p138 = por %p136, %p137
      %p139 = scmp.ne.s32.totalorder %s131, %s133
      %p140 = scmp.eq.s32.totalorder %s34, 1
      %p141 = por %p139, %p140
      %p142 = scmp.ne.s32.totalorder %s133, %s134
      %p143 = scmp.eq.s32.totalorder %s34, 0
      %p144 = por %p142, %p143
      %p145 = scmp.ne.s32.totalorder %s133, %s134
      %p146 = scmp.eq.s32.totalorder %s35, 1
      %p147 = por %p145, %p146
      %p149 = scmp.ne.s32.totalorder %s134, %s148
      %p150 = scmp.eq.s32.totalorder %s35, 0
      %p151 = por %p149, %p150
      %s153 = sadd.s32 %s152, 1
      %p156 = scmp.eq.s32.totalorder %s29, 1
      %p157 = scmp.ne.s32.totalorder %s152, %s154
      %p158 = scmp.eq.s32.totalorder %s29, 0
      %p159 = por %p157, %p158
      %p160 = scmp.ne.s32.totalorder %s152, %s154
      %p161 = scmp.eq.s32.totalorder %s34, 1
      %p162 = por %p160, %p161
      %p163 = scmp.ne.s32.totalorder %s154, %s155
      %p164 = scmp.eq.s32.totalorder %s34, 0
      %p165 = por %p163, %p164
      %p166 = scmp.ne.s32.totalorder %s154, %s155
      %p167 = scmp.eq.s32.totalorder %s35, 1
      %p168 = por %p166, %p167
      %p170 = scmp.ne.s32.totalorder %s155, %s169
      %p171 = scmp.eq.s32.totalorder %s35, 0
      %p172 = por %p170, %p171
      %s174 = sadd.s32 %s173, 1
      %p177 = scmp.eq.s32.totalorder %s29, 1
      %p178 = scmp.ne.s32.totalorder %s173, %s175
      %p179 = scmp.eq.s32.totalorder %s29, 0
      %p180 = por %p178, %p179
      %p181 = scmp.ne.s32.totalorder %s173, %s175
      %p182 = scmp.eq.s32.totalorder %s34, 1
      %p183 = por %p181, %p182
      %p184 = scmp.ne.s32.totalorder %s175, %s176
      %p185 = scmp.eq.s32.totalorder %s34, 0
      %p186 = por %p184, %p185
      %p187 = scmp.ne.s32.totalorder %s175, %s176
      %p188 = scmp.eq.s32.totalorder %s35, 1
      %p189 = por %p187, %p188
      %p191 = scmp.ne.s32.totalorder %s176, %s190
      %p192 = scmp.eq.s32.totalorder %s35, 0
      %p193 = por %p191, %p192
      %s195 = sadd.s32 %s194, 1
      %p198 = scmp.eq.s32.totalorder %s29, 1
      %p199 = scmp.ne.s32.totalorder %s194, %s196
      %p200 = scmp.eq.s32.totalorder %s29, 0
      %p201 = por %p199, %p200
      %p202 = scmp.ne.s32.totalorder %s194, %s196
      %p203 = scmp.eq.s32.totalorder %s34, 1
      %p204 = por %p202, %p203
      %p205 = scmp.ne.s32.totalorder %s196, %s197
      %p206 = scmp.eq.s32.totalorder %s34, 0
      %p207 = por %p205, %p206
      %p208 = scmp.ne.s32.totalorder %s196, %s197
      %p209 = scmp.eq.s32.totalorder %s35, 1
      %p210 = por %p208, %p209
      %p212 = scmp.ne.s32.totalorder %s197, %s211
      %p213 = scmp.eq.s32.totalorder %s35, 0
      %p214 = por %p212, %p213
      %s216 = sadd.s32 %s215, 1
      %p219 = scmp.eq.s32.totalorder %s29, 1
      %p220 = scmp.ne.s32.totalorder %s215, %s217
      %p221 = scmp.eq.s32.totalorder %s29, 0
      %p222 = por %p220, %p221
      %p223 = scmp.ne.s32.totalorder %s215, %s217
      %p224 = scmp.eq.s32.totalorder %s34, 1
      %p225 = por %p223, %p224
      %p226 = scmp.ne.s32.totalorder %s217, %s218
      %p227 = scmp.eq.s32.totalorder %s34, 0
      %p228 = por %p226, %p227
      %p229 = scmp.ne.s32.totalorder %s217, %s218
      %p230 = scmp.eq.s32.totalorder %s35, 1
      %p231 = por %p229, %p230
      %p233 = scmp.ne.s32.totalorder %s218, %s232
      %p234 = scmp.eq.s32.totalorder %s35, 0
      %p235 = por %p233, %p234
      %s237 = sadd.s32 %s236, 1
      %p240 = scmp.eq.s32.totalorder %s29, 1
      %p241 = scmp.ne.s32.totalorder %s236, %s238
      %p242 = scmp.eq.s32.totalorder %s29, 0
      %p243 = por %p241, %p242
      %p244 = scmp.ne.s32.totalorder %s236, %s238
      %p245 = scmp.eq.s32.totalorder %s34, 1
      %p246 = por %p244, %p245
      %p247 = scmp.ne.s32.totalorder %s238, %s239
      %p248 = scmp.eq.s32.totalorder %s34, 0
      %p249 = por %p247, %p248
      %p250 = scmp.ne.s32.totalorder %s238, %s239
      %p251 = scmp.eq.s32.totalorder %s35, 1
      %p252 = por %p250, %p251
      %p254 = scmp.ne.s32.totalorder %s239, %s253
      %p255 = scmp.eq.s32.totalorder %s35, 0
      %p256 = por %p254, %p255
      %s258 = sadd.s32 %s257, 1
      %p261 = scmp.eq.s32.totalorder %s29, 1
      %p262 = scmp.ne.s32.totalorder %s257, %s259
      %p263 = scmp.eq.s32.totalorder %s29, 0
      %p264 = por %p262, %p263
      %p265 = scmp.ne.s32.totalorder %s257, %s259
      %p266 = scmp.eq.s32.totalorder %s34, 1
      %p267 = por %p265, %p266
      %p268 = scmp.ne.s32.totalorder %s259, %s260
      %p269 = scmp.eq.s32.totalorder %s34, 0
      %p270 = por %p268, %p269
      %p271 = scmp.ne.s32.totalorder %s259, %s260
      %p272 = scmp.eq.s32.totalorder %s35, 1
      %p273 = por %p271, %p272
      %p275 = scmp.ne.s32.totalorder %s260, %s274
      %p276 = scmp.eq.s32.totalorder %s35, 0
      %p277 = por %p275, %p276
      %s279 = sadd.s32 %s278, 1
      %p282 = scmp.eq.s32.totalorder %s29, 1
      %p283 = scmp.ne.s32.totalorder %s278, %s280
      %p284 = scmp.eq.s32.totalorder %s29, 0
      %p285 = por %p283, %p284
      %p286 = scmp.ne.s32.totalorder %s278, %s280
      %p287 = scmp.eq.s32.totalorder %s34, 1
      %p288 = por %p286, %p287
      %p289 = scmp.ne.s32.totalorder %s280, %s281
      %p290 = scmp.eq.s32.totalorder %s34, 0
      %p291 = por %p289, %p290
      %p292 = scmp.ne.s32.totalorder %s280, %s281
      %p293 = scmp.eq.s32.totalorder %s35, 1
      %p294 = por %p292, %p293
      %p296 = scmp.ne.s32.totalorder %s281, %s295
      %p297 = scmp.eq.s32.totalorder %s35, 0
      %p298 = por %p296, %p297
      %s300 = sadd.s32 %s299, 1
      %p303 = scmp.eq.s32.totalorder %s29, 1
      %p304 = scmp.ne.s32.totalorder %s299, %s301
      %p305 = scmp.eq.s32.totalorder %s29, 0
      %p306 = por %p304, %p305
      %p307 = scmp.ne.s32.totalorder %s299, %s301
      %p308 = scmp.eq.s32.totalorder %s34, 1
      %p309 = por %p307, %p308
      %p310 = scmp.ne.s32.totalorder %s301, %s302
      %p311 = scmp.eq.s32.totalorder %s34, 0
      %p312 = por %p310, %p311
      %p313 = scmp.ne.s32.totalorder %s301, %s302
      %p314 = scmp.eq.s32.totalorder %s35, 1
      %p315 = por %p313, %p314
      %p317 = scmp.ne.s32.totalorder %s302, %s316
      %p318 = scmp.eq.s32.totalorder %s35, 0
      %p319 = por %p317, %p318
      %s321 = sadd.s32 %s320, 1
      %p324 = scmp.eq.s32.totalorder %s29, 1
      %p325 = scmp.ne.s32.totalorder %s320, %s322
      %p326 = scmp.eq.s32.totalorder %s29, 0
      %p327 = por %p325, %p326
      %p328 = scmp.ne.s32.totalorder %s320, %s322
      %p329 = scmp.eq.s32.totalorder %s34, 1
      %p330 = por %p328, %p329
      %p331 = scmp.ne.s32.totalorder %s322, %s323
      %p332 = scmp.eq.s32.totalorder %s34, 0
      %p333 = por %p331, %p332
      %p334 = scmp.ne.s32.totalorder %s322, %s323
      %p335 = scmp.eq.s32.totalorder %s35, 1
      %p336 = por %p334, %p335
      %p338 = scmp.ne.s32.totalorder %s323, %s337
      %p339 = scmp.eq.s32.totalorder %s35, 0
      %p340 = por %p338, %p339
      %s342 = sadd.s32 %s341, 1
      %p345 = scmp.eq.s32.totalorder %s29, 1
      %p346 = scmp.ne.s32.totalorder %s341, %s343
      %p347 = scmp.eq.s32.totalorder %s29, 0
      %p348 = por %p346, %p347
      %p349 = scmp.ne.s32.totalorder %s341, %s343
      %p350 = scmp.eq.s32.totalorder %s34, 1
      %p351 = por %p349, %p350
      %p352 = scmp.ne.s32.totalorder %s343, %s344
      %p353 = scmp.eq.s32.totalorder %s34, 0
      %p354 = por %p352, %p353
      %p355 = scmp.ne.s32.totalorder %s343, %s344
      %p356 = scmp.eq.s32.totalorder %s35, 1
      %p357 = por %p355, %p356
      %p359 = scmp.ne.s32.totalorder %s344, %s358
      %p360 = scmp.eq.s32.totalorder %s35, 0
      %p361 = por %p359, %p360
      %s362 = ssub.s32 %s29, %s36
      %p363 = scmp.eq.s32.totalorder %s362, 0
      %s365 = sadd.s32 %s364, 1
      %s366 = scalar_select %p363, %s364, %s365
      %p369 = pneg %p363
      %p370 = scmp.eq.s32.totalorder %s29, 1
      %p371 = por %p369, %p370
      %p372 = scmp.ne.s32.totalorder %s364, %s367
      %p373 = scmp.eq.s32.totalorder %s29, 0
      %p374 = por %p372, %p373
      %p375 = scmp.ne.s32.totalorder %s364, %s367
      %p376 = scmp.eq.s32.totalorder %s34, 1
      %p377 = por %p375, %p376
      %p378 = scmp.ne.s32.totalorder %s367, %s368
      %p379 = scmp.eq.s32.totalorder %s34, 0
      %p380 = por %p378, %p379
      %p381 = scmp.ne.s32.totalorder %s367, %s368
      %p382 = scmp.eq.s32.totalorder %s35, 1
      %p383 = por %p381, %p382
      %p385 = scmp.ne.s32.totalorder %s368, %s384
      %p386 = scmp.eq.s32.totalorder %s35, 0
      %p387 = por %p385, %p386
      %p388 = scmp.le.s32.totalorder 1, %s29
      %p389 = scmp.lt.s32.totalorder %s29, 3
      %p390 = pnand %p388, %p389
      %p391 = pneg %p390
      // Predicated region
      $region9: #{tpu_custom_call.1} parent=5 // pred_check
        _
      $region10: #{tpu_custom_call.1} parent=5 // pred_check_branch
        %393 = sbr.rel (%p390) target = $region12
      $region11: #{tpu_custom_call.1} parent=5 // pred_region
        %s394 = ssub.s32 %s29, 1
        // Predicated region
        $region13: #{tpu_custom_call.1} parent=11 // pred_check
          %p395 = pneg %p102
        $region14: #{tpu_custom_call.1} parent=11 // pred_check_branch
          %397 = sbr.rel (%p395) target = $region16
        $region15: #{tpu_custom_call.1} parent=11 // pred_region
          %s399 = ssub.s32 128, 128
          %400 = vsyncadd [#allocation6], %s399
          %s402 = sshll.u32 [#allocation5], 4
          %s403 = int_to_ptr.vmem [resolvable:$true] %s402
          %405 = dma.hbm_to_vmem [thread:$0]  %s2, 128, %s403, [#allocation6]
        $region16: #{tpu_custom_call.1} parent=11 // pred_fallthru
          _
        // Predicated region
        $region17: #{tpu_custom_call.1} parent=11 // pred_check
          %p406 = pneg %p123
        $region18: #{tpu_custom_call.1} parent=11 // pred_check_branch
          %408 = sbr.rel (%p406) target = $region20
        $region19: #{tpu_custom_call.1} parent=11 // pred_region
          %s410 = ssub.s32 128, 128
          %411 = vsyncadd [#allocation6], %s410
          %s413 = sshll.u32 [#allocation7], 4
          %s414 = int_to_ptr.vmem [resolvable:$true] %s413
          %416 = dma.hbm_to_vmem [thread:$0]  %s3, 128, %s414, [#allocation6]
        $region20: #{tpu_custom_call.1} parent=11 // pred_fallthru
          _
        // Predicated region
        $region21: #{tpu_custom_call.1} parent=11 // pred_check
          %p417 = pneg %p144
        $region22: #{tpu_custom_call.1} parent=11 // pred_check_branch
          %419 = sbr.rel (%p417) target = $region24
        $region23: #{tpu_custom_call.1} parent=11 // pred_region
          _
        $region24: #{tpu_custom_call.1} parent=11 // pred_fallthru
          _
        // Predicated region
        $region25: #{tpu_custom_call.1} parent=11 // pred_check
          %p420 = pneg %p165
        $region26: #{tpu_custom_call.1} parent=11 // pred_check_branch
          %422 = sbr.rel (%p420) target = $region28
        $region27: #{tpu_custom_call.1} parent=11 // pred_region
          %s424 = ssub.s32 128, 128
          %425 = vsyncadd [#allocation9], %s424
          %s427 = sshll.u32 [#allocation8], 4
          %s428 = int_to_ptr.vmem [resolvable:$true] %s427
          %430 = dma.hbm_to_vmem [thread:$0]  %s5, 128, %s428, [#allocation9]
        $region28: #{tpu_custom_call.1} parent=11 // pred_fallthru
          _
        // Predicated region
        $region29: #{tpu_custom_call.1} parent=11 // pred_check
          %p431 = pneg %p186
        $region30: #{tpu_custom_call.1} parent=11 // pred_check_branch
          %433 = sbr.rel (%p431) target = $region32
        $region31: #{tpu_custom_call.1} parent=11 // pred_region
          _
        $region32: #{tpu_custom_call.1} parent=11 // pred_fallthru
          _
        // Predicated region
        $region33: #{tpu_custom_call.1} parent=11 // pred_check
          %p434 = pneg %p207
        $region34: #{tpu_custom_call.1} parent=11 // pred_check_branch
          %436 = sbr.rel (%p434) target = $region36
        $region35: #{tpu_custom_call.1} parent=11 // pred_region
          _
        $region36: #{tpu_custom_call.1} parent=11 // pred_fallthru
          _
        // Predicated region
        $region37: #{tpu_custom_call.1} parent=11 // pred_check
          %p437 = pneg %p228
        $region38: #{tpu_custom_call.1} parent=11 // pred_check_branch
          %439 = sbr.rel (%p437) target = $region40
        $region39: #{tpu_custom_call.1} parent=11 // pred_region
          _
        $region40: #{tpu_custom_call.1} parent=11 // pred_fallthru
          _
        // Predicated region
        $region41: #{tpu_custom_call.1} parent=11 // pred_check
          %p440 = pneg %p249
        $region42: #{tpu_custom_call.1} parent=11 // pred_check_branch
          %442 = sbr.rel (%p440) target = $region44
        $region43: #{tpu_custom_call.1} parent=11 // pred_region
          _
        $region44: #{tpu_custom_call.1} parent=11 // pred_fallthru
          _
        // Predicated region
        $region45: #{tpu_custom_call.1} parent=11 // pred_check
          %p443 = pneg %p270
        $region46: #{tpu_custom_call.1} parent=11 // pred_check_branch
          %445 = sbr.rel (%p443) target = $region48
        $region47: #{tpu_custom_call.1} parent=11 // pred_region
          _
        $region48: #{tpu_custom_call.1} parent=11 // pred_fallthru
          _
        // Predicated region
        $region49: #{tpu_custom_call.1} parent=11 // pred_check
          %p446 = pneg %p291
        $region50: #{tpu_custom_call.1} parent=11 // pred_check_branch
          %448 = sbr.rel (%p446) target = $region52
        $region51: #{tpu_custom_call.1} parent=11 // pred_region
          _
        $region52: #{tpu_custom_call.1} parent=11 // pred_fallthru
          _
        // Predicated region
        $region53: #{tpu_custom_call.1} parent=11 // pred_check
          %p449 = pneg %p312
        $region54: #{tpu_custom_call.1} parent=11 // pred_check_branch
          %451 = sbr.rel (%p449) target = $region56
        $region55: #{tpu_custom_call.1} parent=11 // pred_region
          _
        $region56: #{tpu_custom_call.1} parent=11 // pred_fallthru
          _
        // Predicated region
        $region57: #{tpu_custom_call.1} parent=11 // pred_check
          %p452 = pneg %p333
        $region58: #{tpu_custom_call.1} parent=11 // pred_check_branch
          %454 = sbr.rel (%p452) target = $region60
        $region59: #{tpu_custom_call.1} parent=11 // pred_region
          _
        $region60: #{tpu_custom_call.1} parent=11 // pred_fallthru
          _
        // Predicated region
        $region61: #{tpu_custom_call.1} parent=11 // pred_check
          %p455 = pneg %p354
        $region62: #{tpu_custom_call.1} parent=11 // pred_check_branch
          %457 = sbr.rel (%p455) target = $region64
        $region63: #{tpu_custom_call.1} parent=11 // pred_region
          _
        $region64: #{tpu_custom_call.1} parent=11 // pred_fallthru
          _
      $region12: #{tpu_custom_call.1} parent=5 // pred_fallthru
        _
      %p458 = scmp.lt.s32.totalorder %s29, 2
      // Predicated region
      $region65: #{tpu_custom_call.1} parent=5 // pred_check
        %p459 = pneg %p458
      $region66: #{tpu_custom_call.1} parent=5 // pred_check_branch
        %461 = sbr.rel (%p459) target = $region68
      $region67: #{tpu_custom_call.1} parent=5 // pred_region
        // Predicated region
        $region69: #{tpu_custom_call.1} parent=67 // pred_check
          %p462 = pneg %p49
        $region70: #{tpu_custom_call.1} parent=67 // pred_check_branch
          %464 = sbr.rel (%p462) target = $region72
        $region71: #{tpu_custom_call.1} parent=67 // pred_region
          %p465 = scmp.lt.s32.totalorder %s29, 1
          %s466 = scalar_select %p465, %s29, 1
          %s467 = smul.addr %s466, 2
          %s468 = smul.addr %s467, 8
          %s469 = scalar_lea.vmem %s0, %s468
        $region72: #{tpu_custom_call.1} parent=67 // pred_fallthru
          _
        // Predicated region
        $region73: #{tpu_custom_call.1} parent=67 // pred_check
          %p470 = pneg %p75
        $region74: #{tpu_custom_call.1} parent=67 // pred_check_branch
          %472 = sbr.rel (%p470) target = $region76
        $region75: #{tpu_custom_call.1} parent=67 // pred_region
          %s473 = sand.u32 %s65, 1
          %s474 = scalar_lea.sflag [#allocation3], %s473
          %s475 = sand.u32 %s65, 1
          %s476 = smul.addr %s475, 64
          %s477 = scalar_lea.vmem [#allocation2], %s476
          %s479 = ssub.s32 1024, 1024
          %480 = vsyncadd %s474, %s479
          %s481 = smul.addr %s29, 8
          %s482 = smul.addr %s481, 128
          %s483 = scalar_lea.hbm %s1, %s482
          %s484 = sshll.u32 %s477, 4
          %s485 = int_to_ptr.vmem [resolvable:$true] %s484
          %490 = dma.hbm_to_vmem [thread:$0]  %s483, 1024, %s485, %s474, 128, 128, 8
        $region76: #{tpu_custom_call.1} parent=67 // pred_fallthru
          _
      $region68: #{tpu_custom_call.1} parent=5 // pred_fallthru
        _
      %p491 = scmp.le.s32.totalorder 1, %s29
      %p492 = scmp.lt.s32.totalorder %s29, 3
      %p493 = pnand %p491, %p492
      %p494 = pneg %p493
      // Predicated region
      $region77: #{tpu_custom_call.1} parent=5 // pred_check
        _
      $region78: #{tpu_custom_call.1} parent=5 // pred_check_branch
        %496 = sbr.rel (%p493) target = $region80
      $region79: #{tpu_custom_call.1} parent=5 // pred_region
        %s497 = ssub.s32 %s29, 1
        %s498 = sand.u32 %s68, 1
        %s499 = scalar_lea.sflag [#allocation3], %s498
        %s500 = sand.u32 %s68, 1
        %s501 = smul.addr %s500, 64
        %s502 = scalar_lea.vmem [#allocation2], %s501
        // Predicated region
        $region81: #{tpu_custom_call.1} parent=79 // pred_check
          %p503 = pneg %p81
        $region82: #{tpu_custom_call.1} parent=79 // pred_check_branch
          %505 = sbr.rel (%p503) target = $region84
        $region83: #{tpu_custom_call.1} parent=79 // pred_region
          %506 = dma.done %s499, 1024
        $region84: #{tpu_custom_call.1} parent=79 // pred_fallthru
          _
        // Predicated region
        $region85: #{tpu_custom_call.1} parent=79 // pred_check
          %p507 = pneg %p102
        $region86: #{tpu_custom_call.1} parent=79 // pred_check_branch
          %509 = sbr.rel (%p507) target = $region88
        $region87: #{tpu_custom_call.1} parent=79 // pred_region
          %510 = dma.done [#allocation6], 128
        $region88: #{tpu_custom_call.1} parent=79 // pred_fallthru
          _
        // Predicated region
        $region89: #{tpu_custom_call.1} parent=79 // pred_check
          %p511 = pneg %p123
        $region90: #{tpu_custom_call.1} parent=79 // pred_check_branch
          %513 = sbr.rel (%p511) target = $region92
        $region91: #{tpu_custom_call.1} parent=79 // pred_region
          %514 = dma.done [#allocation6], 128
        $region92: #{tpu_custom_call.1} parent=79 // pred_fallthru
          _
        // Predicated region
        $region93: #{tpu_custom_call.1} parent=79 // pred_check
          %p515 = pneg %p165
        $region94: #{tpu_custom_call.1} parent=79 // pred_check_branch
          %517 = sbr.rel (%p515) target = $region96
        $region95: #{tpu_custom_call.1} parent=79 // pred_region
          %518 = dma.done [#allocation9], 128
        $region96: #{tpu_custom_call.1} parent=79 // pred_fallthru
          _
        %p519 = scmp.lt.s32.totalorder %s34, 1
        %s520 = scalar_select %p519, %s34, 1
        %s521 = smul.addr %s520, 2
        %s522 = smul.addr %s521, 8
        %s523 = scalar_lea.vmem %s0, %s522
        %p524 = pneg %p55
        %p525 = pneg %p52
        %s526 = sand.u32 %s68, 1
        %s527 = scalar_lea.sflag [#allocation3], %s526
        %s528 = sand.u32 %s68, 1
        %s529 = smul.addr %s528, 64
        %s530 = scalar_lea.vmem [#allocation2], %s529
        %p531 = pneg %p81
        %p532 = pneg %p78
        %p533 = pneg %p102
        %p534 = pneg %p99
        %p535 = pneg %p123
        %p536 = pneg %p120
        %p537 = pneg %p144
        %p538 = pneg %p141
        %p539 = pneg %p165
        %p540 = pneg %p162
        %p541 = pneg %p186
        %p542 = pneg %p183
        %p543 = pneg %p207
        %p544 = pneg %p204
        %p545 = pneg %p228
        %p546 = pneg %p225
        %p547 = pneg %p249
        %p548 = pneg %p246
        %p549 = pneg %p270
        %p550 = pneg %p267
        %p551 = pneg %p291
        %p552 = pneg %p288
        %p553 = pneg %p312
        %p554 = pneg %p309
        %p555 = pneg %p333
        %p556 = pneg %p330
        %p557 = pneg %p354
        %p558 = pneg %p351
        %p559 = pneg %p380
        %p560 = pneg %p377
        %s561 = sand.u32 %s367, 1
        %s562 = scalar_lea.sflag [#allocation4], %s561
        %s563 = sand.u32 %s367, 1
        %s564 = smul.addr %s563, 32
        %s565 = scalar_lea.vmem [#allocation10], %s564
        %p566 = scmp.lt.s32.totalorder %s34, 1
        %s567 = scalar_select %p566, %s34, 1
        %s568 = smul.addr %s567, 2
        %s569 = smul.addr %s568, 8
        %s570 = scalar_lea.vmem %s0, %s569
        %v572 = vlaneseq
        %v573 = vand.u32 %v572, 127
        %v574 = vadd.s32 %v573, 128
        %vm575 = vcmp.lt.s32.totalorder %v573, 0
        %v576 = vsub.s32 0, %v573
        %v577 = vsel %vm575, %v576, %v573
        %v578 = vshrl.u32 %v577, 4
        %v579 = vand.u32 %v577, 15
        %v580 = vsub.s32 0, %v579
        %v581 = vsel %vm575, %v580, %v579
        %vm582 = vcmp.lt.s32.totalorder %v574, 0
        %v583 = vsub.s32 0, %v574
        %v584 = vsel %vm582, %v583, %v574
        %v585 = vshrl.u32 %v584, 4
        %v586 = vand.u32 %v584, 15
        %v587 = vsub.s32 0, %v586
        %v588 = vsel %vm582, %v587, %v586
        %vm589 = vcmp.ne.s32.totalorder %v581, 0
        %vm590 = vcmp.ne.s32.totalorder %v588, 0
        %vm591 = vcmp.lt.s32.totalorder %v581, 0
        %vm592 = vcmp.lt.s32.totalorder %v588, 0
        %vm593 = vmand %vm591, %vm589
        %vm594 = vmand %vm592, %vm590
        %v595 = vadd.s32 %v581, 16
        %v596 = vadd.s32 %v588, 16
        %v597 = vsel %vm593, %v595, %v581
        %v598 = vsel %vm594, %v596, %v588
        %vm599 = vcmp.gt.s32.totalorder %v597, 0
        %vm600 = vcmp.gt.s32.totalorder %v598, 0
        %vm601 = vcmp.lt.s32.totalorder %v597, 15
        %vm602 = vcmp.lt.s32.totalorder %v598, 15
        %v603 = vld [vmem:[%s570] sm:$0xff]
        %v604 = vld [vmem:[%s570 + $0x8] sm:$0xff]
        %607 = vrot.lane.b32.xlu0 %v603, 17
        %v608 = vpop.permute.xlu0 %607
        %609 = vrot.lane.b32.xlu0 %v604, 17
        %v610 = vpop.permute.xlu0 %609
        %vm611 = vcmask 138240
        %v612 = vsel %vm611, %v608, %v610
        %v616 = vsel %vm611, 0.0, %v608
        %v617 = vsel %vm611, %v610, 0.0
        %v618 = vsel %vm599, 1, 0
        %v619 = vsel %vm600, 1, 0
        %vm620 = vcmp.eq.s32.totalorder %v618, 1
        %vm621 = vcmp.eq.s32.totalorder %v619, 1
        %v622 = vsel %vm620, %v616, 0.0
        %v623 = vsel %vm621, %v612, 0.0
        %v624 = vsel %vm601, 1, 0
        %v625 = vsel %vm602, 1, 0
        %vm626 = vcmp.eq.s32.totalorder %v624, 1
        %vm627 = vcmp.eq.s32.totalorder %v625, 1
        %630 = vrot.lane.b32.xlu0 %v616, 126
        %v631 = vpop.permute.xlu0 %630
        %632 = vrot.lane.b32.xlu0 %v612, 126
        %v633 = vpop.permute.xlu0 %632
        %634 = vrot.lane.b32.xlu0 %v617, 126
        %v635 = vpop.permute.xlu0 %634
        %vm636 = vcmask 1031168
        %v637 = vsel %vm636, %v631, %v633
        %v638 = vsel %vm636, %v633, %v635
        %v641 = vsel %vm626, %v637, 0.0
        %v642 = vsel %vm627, %v638, 0.0
        %643 = vrot.lane.b32.xlu0 %v616, 112
        %v644 = vpop.permute.xlu0 %643
        %645 = vrot.lane.b32.xlu0 %v612, 112
        %v646 = vpop.permute.xlu0 %645
        %647 = vrot.lane.b32.xlu0 %v617, 112
        %v648 = vpop.permute.xlu0 %647
        %vm649 = vcmask 916480
        %v650 = vsel %vm649, %v644, %v646
        %v651 = vsel %vm649, %v646, %v648
        %v654 = vsel %vm620, %v650, 0.0
        %v655 = vsel %vm621, %v651, 0.0
        %656 = vrot.lane.b32.xlu0 %v616, 110
        %v657 = vpop.permute.xlu0 %656
        %658 = vrot.lane.b32.xlu0 %v612, 110
        %v659 = vpop.permute.xlu0 %658
        %660 = vrot.lane.b32.xlu0 %v617, 110
        %v661 = vpop.permute.xlu0 %660
        %vm662 = vcmask 900096
        %v663 = vsel %vm662, %v657, %v659
        %v664 = vsel %vm662, %v659, %v661
        %v667 = vsel %vm626, %v663, 0.0
        %v668 = vsel %vm627, %v664, 0.0
        %669 = vrot.lane.b32.xlu0 %v616, 96
        %v670 = vpop.permute.xlu0 %669
        %671 = vrot.lane.b32.xlu0 %v612, 96
        %v672 = vpop.permute.xlu0 %671
        %673 = vrot.lane.b32.xlu0 %v617, 96
        %v674 = vpop.permute.xlu0 %673
        %vm675 = vcmask 785408
        %v676 = vsel %vm675, %v670, %v672
        %v677 = vsel %vm675, %v672, %v674
        %v680 = vsel %vm620, %v676, 0.0
        %v681 = vsel %vm621, %v677, 0.0
        %682 = vrot.lane.b32.xlu0 %v616, 94
        %v683 = vpop.permute.xlu0 %682
        %684 = vrot.lane.b32.xlu0 %v612, 94
        %v685 = vpop.permute.xlu0 %684
        %686 = vrot.lane.b32.xlu0 %v617, 94
        %v687 = vpop.permute.xlu0 %686
        %vm688 = vcmask 769024
        %v689 = vsel %vm688, %v683, %v685
        %v690 = vsel %vm688, %v685, %v687
        %v693 = vsel %vm626, %v689, 0.0
        %v694 = vsel %vm627, %v690, 0.0
        %695 = vrot.lane.b32.xlu0 %v616, 127
        %v696 = vpop.permute.xlu0 %695
        %697 = vrot.lane.b32.xlu0 %v612, 127
        %v698 = vpop.permute.xlu0 %697
        %699 = vrot.lane.b32.xlu0 %v617, 127
        %v700 = vpop.permute.xlu0 %699
        %vm701 = vcmask 1039360
        %v702 = vsel %vm701, %v696, %v698
        %v703 = vsel %vm701, %v698, %v700
        %706 = vrot.lane.b32.xlu0 %v616, 111
        %v707 = vpop.permute.xlu0 %706
        %708 = vrot.lane.b32.xlu0 %v612, 111
        %v709 = vpop.permute.xlu0 %708
        %710 = vrot.lane.b32.xlu0 %v617, 111
        %v711 = vpop.permute.xlu0 %710
        %vm712 = vcmask 908288
        %v713 = vsel %vm712, %v707, %v709
        %v714 = vsel %vm712, %v709, %v711
        %717 = vrot.lane.b32.xlu0 %v616, 95
        %v718 = vpop.permute.xlu0 %717
        %719 = vrot.lane.b32.xlu0 %v612, 95
        %v720 = vpop.permute.xlu0 %719
        %721 = vrot.lane.b32.xlu0 %v617, 95
        %v722 = vpop.permute.xlu0 %721
        %vm723 = vcmask 777216
        %v724 = vsel %vm723, %v718, %v720
        %v725 = vsel %vm723, %v720, %v722
        %v728 = vld [vmem:[#allocation7] sm:$0xff]
        %v729 = vpack.c.bf16 %v728, %v728
        %v730 = vpack.c.bf16 %v702, %v622
        %v731 = vpack.c.bf16 %v703, %v623
        %v732 = vpack.c.bf16 %v654, %v641
        %v733 = vpack.c.bf16 %v655, %v642
        %v734 = vpack.c.bf16 %v667, %v713
        %v735 = vpack.c.bf16 %v668, %v714
        %v736 = vpack.c.bf16 %v724, %v680
        %v737 = vpack.c.bf16 %v725, %v681
        %v738 = vpack.c.bf16 %v693, %v693
        %v739 = vpack.c.bf16 %v694, %v694
        %v740 = vld [vmem:[%s4] sm:$0xff]
        %742 = vset.pattern.permute.xlu0 0
        %743 = vperm.xlu0 %742, %v740
        %v744 = vpop.permute.xlu0 %743
        %vm746 = vcmask 588800
        %v748 = vsel %vm746, %v729, 0
        %vm750 = vcmask 1043456
        %v752 = vsel %vm750, %v738, 0
        %v755 = vsel %vm750, %v739, 0
        %757 = vmatprep.subr.bf16.mxu0 %v731
        %758 = vmatpush1.bf16.msra.mxu0 %v730
        %759 = vmatprep.subr.bf16.mxu0 %v733
        %760 = vmatpush1.bf16.msra.mxu0 %v732
        %761 = vmatprep.subr.bf16.mxu0 %v735
        %762 = vmatpush1.bf16.msra.mxu0 %v734
        %763 = vmatprep.subr.bf16.mxu0 %v737
        %764 = vmatpush1.bf16.msra.mxu0 %v736
        %765 = vmatprep.subr.bf16.mxu0 %v755
        %766 = vmatpush1.bf16.msra.mxu0 %v752
        %767 = vmatprep.subr.bf16.mxu0 0
        %768 = vmatpush1.bf16.msra.mxu0 0
        %769 = vmatprep.subr.bf16.mxu0 0
        %770 = vmatpush1.bf16.msra.mxu0 0
        %771 = vmatprep.subr.bf16.mxu0 0
        %772 = vmatpush1.bf16.msra.mxu0 0
        %773 = vmatprep.subr.bf16.mxu0 0
        %774 = vmatpush1.bf16.msra.mxu0 0
        %775 = vmatprep.subr.bf16.mxu0 0
        %776 = vmatpush1.bf16.msra.mxu0 0
        %777 = vmatprep.subr.bf16.mxu0 0
        %778 = vmatpush1.bf16.msra.mxu0 0
        %779 = vmatprep.subr.bf16.mxu0 0
        %780 = vmatpush1.bf16.msra.mxu0 0
        %781 = vmatprep.subr.bf16.mxu0 0
        %782 = vmatpush1.bf16.msra.mxu0 0
        %783 = vmatprep.subr.bf16.mxu0 0
        %784 = vmatpush1.bf16.msra.mxu0 0
        %785 = vmatprep.subr.bf16.mxu0 0
        %786 = vmatpush1.bf16.msra.mxu0 0
        %787 = vmatprep.subr.bf16.mxu0 0
        %788 = vmatpush1.bf16.msra.mxu0 0
        %789 = vmatprep.mubr.bf16.mxu0 0
        %790 = vmatmul.mubr.bf16.gmra.mrb[0].mxu0 %v748
        %v791 = vpop.f32.mrb[0].mxu0
        %v792 = vadd.f32 %v744, %v791
        %v793 = vpop.f32.mrb[0].mxu0
        %v794 = vadd.f32 %v744, %v793
        %v795 = vpop.f32.mrb[0].mxu0
        %v796 = vpop.f32.mrb[0].mxu0
        %797 = vdwg.mxu0
        %v798 = vmax.f32 %v792, 0.0
        %v799 = vmax.f32 %v794, 0.0
        %802 = vrot.lane.b32.xlu0 %v798, 17
        %v803 = vpop.permute.xlu0 %802
        %804 = vrot.lane.b32.xlu0 %v799, 17
        %v805 = vpop.permute.xlu0 %804
        %v806 = vsel %vm611, %v803, %v805
        %v810 = vsel %vm611, 0.0, %v803
        %v811 = vsel %vm611, %v805, 0.0
        %v812 = vsel %vm620, %v810, 0.0
        %v813 = vsel %vm621, %v806, 0.0
        %816 = vrot.lane.b32.xlu0 %v810, 126
        %v817 = vpop.permute.xlu0 %816
        %818 = vrot.lane.b32.xlu0 %v806, 126
        %v819 = vpop.permute.xlu0 %818
        %820 = vrot.lane.b32.xlu0 %v811, 126
        %v821 = vpop.permute.xlu0 %820
        %v822 = vsel %vm636, %v817, %v819
        %v823 = vsel %vm636, %v819, %v821
        %v826 = vsel %vm626, %v822, 0.0
        %v827 = vsel %vm627, %v823, 0.0
        %828 = vrot.lane.b32.xlu0 %v810, 112
        %v829 = vpop.permute.xlu0 %828
        %830 = vrot.lane.b32.xlu0 %v806, 112
        %v831 = vpop.permute.xlu0 %830
        %832 = vrot.lane.b32.xlu0 %v811, 112
        %v833 = vpop.permute.xlu0 %832
        %v834 = vsel %vm649, %v829, %v831
        %v835 = vsel %vm649, %v831, %v833
        %v838 = vsel %vm620, %v834, 0.0
        %v839 = vsel %vm621, %v835, 0.0
        %840 = vrot.lane.b32.xlu0 %v810, 110
        %v841 = vpop.permute.xlu0 %840
        %842 = vrot.lane.b32.xlu0 %v806, 110
        %v843 = vpop.permute.xlu0 %842
        %844 = vrot.lane.b32.xlu0 %v811, 110
        %v845 = vpop.permute.xlu0 %844
        %v846 = vsel %vm662, %v841, %v843
        %v847 = vsel %vm662, %v843, %v845
        %v850 = vsel %vm626, %v846, 0.0
        %v851 = vsel %vm627, %v847, 0.0
        %852 = vrot.lane.b32.xlu0 %v810, 96
        %v853 = vpop.permute.xlu0 %852
        %854 = vrot.lane.b32.xlu0 %v806, 96
        %v855 = vpop.permute.xlu0 %854
        %856 = vrot.lane.b32.xlu0 %v811, 96
        %v857 = vpop.permute.xlu0 %856
        %v858 = vsel %vm675, %v853, %v855
        %v859 = vsel %vm675, %v855, %v857
        %v862 = vsel %vm620, %v858, 0.0
        %v863 = vsel %vm621, %v859, 0.0
        %864 = vrot.lane.b32.xlu0 %v810, 94
        %v865 = vpop.permute.xlu0 %864
        %866 = vrot.lane.b32.xlu0 %v806, 94
        %v867 = vpop.permute.xlu0 %866
        %868 = vrot.lane.b32.xlu0 %v811, 94
        %v869 = vpop.permute.xlu0 %868
        %v870 = vsel %vm688, %v865, %v867
        %v871 = vsel %vm688, %v867, %v869
        %v874 = vsel %vm626, %v870, 0.0
        %v875 = vsel %vm627, %v871, 0.0
        %876 = vrot.lane.b32.xlu0 %v810, 127
        %v877 = vpop.permute.xlu0 %876
        %878 = vrot.lane.b32.xlu0 %v806, 127
        %v879 = vpop.permute.xlu0 %878
        %880 = vrot.lane.b32.xlu0 %v811, 127
        %v881 = vpop.permute.xlu0 %880
        %v882 = vsel %vm701, %v877, %v879
        %v883 = vsel %vm701, %v879, %v881
        %886 = vrot.lane.b32.xlu0 %v810, 111
        %v887 = vpop.permute.xlu0 %886
        %888 = vrot.lane.b32.xlu0 %v806, 111
        %v889 = vpop.permute.xlu0 %888
        %890 = vrot.lane.b32.xlu0 %v811, 111
        %v891 = vpop.permute.xlu0 %890
        %v892 = vsel %vm712, %v887, %v889
        %v893 = vsel %vm712, %v889, %v891
        %896 = vrot.lane.b32.xlu0 %v810, 95
        %v897 = vpop.permute.xlu0 %896
        %898 = vrot.lane.b32.xlu0 %v806, 95
        %v899 = vpop.permute.xlu0 %898
        %900 = vrot.lane.b32.xlu0 %v811, 95
        %v901 = vpop.permute.xlu0 %900
        %v902 = vsel %vm723, %v897, %v899
        %v903 = vsel %vm723, %v899, %v901
        %v906 = vld [vmem:[#allocation8] sm:$0xff]
        %v907 = vpack.c.bf16 %v906, %v906
        %v908 = vpack.c.bf16 %v882, %v812
        %v909 = vpack.c.bf16 %v883, %v813
        %v910 = vpack.c.bf16 %v838, %v826
        %v911 = vpack.c.bf16 %v839, %v827
        %v912 = vpack.c.bf16 %v850, %v892
        %v913 = vpack.c.bf16 %v851, %v893
        %v914 = vpack.c.bf16 %v902, %v862
        %v915 = vpack.c.bf16 %v903, %v863
        %v916 = vpack.c.bf16 %v874, %v874
        %v917 = vpack.c.bf16 %v875, %v875
        %v918 = vld [vmem:[%s6] sm:$0xff]
        %920 = vset.pattern.permute.xlu0 0
        %921 = vperm.xlu0 %920, %v918
        %v922 = vpop.permute.xlu0 %921
        %v925 = vsel %vm746, %v907, 0
        %v928 = vsel %vm750, %v916, 0
        %v931 = vsel %vm750, %v917, 0
        %933 = vmatprep.subr.bf16.mxu0 %v909
        %934 = vmatpush1.bf16.msra.mxu0 %v908
        %935 = vmatprep.subr.bf16.mxu0 %v911
        %936 = vmatpush1.bf16.msra.mxu0 %v910
        %937 = vmatprep.subr.bf16.mxu0 %v913
        %938 = vmatpush1.bf16.msra.mxu0 %v912
        %939 = vmatprep.subr.bf16.mxu0 %v915
        %940 = vmatpush1.bf16.msra.mxu0 %v914
        %941 = vmatprep.subr.bf16.mxu0 %v931
        %942 = vmatpush1.bf16.msra.mxu0 %v928
        %943 = vmatprep.subr.bf16.mxu0 0
        %944 = vmatpush1.bf16.msra.mxu0 0
        %945 = vmatprep.subr.bf16.mxu0 0
        %946 = vmatpush1.bf16.msra.mxu0 0
        %947 = vmatprep.subr.bf16.mxu0 0
        %948 = vmatpush1.bf16.msra.mxu0 0
        %949 = vmatprep.subr.bf16.mxu0 0
        %950 = vmatpush1.bf16.msra.mxu0 0
        %951 = vmatprep.subr.bf16.mxu0 0
        %952 = vmatpush1.bf16.msra.mxu0 0
        %953 = vmatprep.subr.bf16.mxu0 0
        %954 = vmatpush1.bf16.msra.mxu0 0
        %955 = vmatprep.subr.bf16.mxu0 0
        %956 = vmatpush1.bf16.msra.mxu0 0
        %957 = vmatprep.subr.bf16.mxu0 0
        %958 = vmatpush1.bf16.msra.mxu0 0
        %959 = vmatprep.subr.bf16.mxu0 0
        %960 = vmatpush1.bf16.msra.mxu0 0
        %961 = vmatprep.subr.bf16.mxu0 0
        %962 = vmatpush1.bf16.msra.mxu0 0
        %963 = vmatprep.subr.bf16.mxu0 0
        %964 = vmatpush1.bf16.msra.mxu0 0
        %965 = vmatprep.mubr.bf16.mxu0 0
        %966 = vmatmul.mubr.bf16.gmra.mrb[0].mxu0 %v925
        %v967 = vpop.f32.mrb[0].mxu0
        %v968 = vadd.f32 %v922, %v967
        %v969 = vpop.f32.mrb[0].mxu0
        %v970 = vadd.f32 %v922, %v969
        %v971 = vpop.f32.mrb[0].mxu0
        %v972 = vpop.f32.mrb[0].mxu0
        %973 = vdwg.mxu0
        %v974 = vmax.f32 %v968, 0.0
        %v975 = vmax.f32 %v970, 0.0
        %978 = vrot.lane.b32.xlu0 %v974, 17
        %v979 = vpop.permute.xlu0 %978
        %980 = vrot.lane.b32.xlu0 %v975, 17
        %v981 = vpop.permute.xlu0 %980
        %v982 = vsel %vm611, %v979, %v981
        %v986 = vsel %vm611, 0.0, %v979
        %v987 = vsel %vm611, %v981, 0.0
        %v988 = vsel %vm620, %v986, 0.0
        %v989 = vsel %vm621, %v982, 0.0
        %992 = vrot.lane.b32.xlu0 %v986, 126
        %v993 = vpop.permute.xlu0 %992
        %994 = vrot.lane.b32.xlu0 %v982, 126
        %v995 = vpop.permute.xlu0 %994
        %996 = vrot.lane.b32.xlu0 %v987, 126
        %v997 = vpop.permute.xlu0 %996
        %v998 = vsel %vm636, %v993, %v995
        %v999 = vsel %vm636, %v995, %v997
        %v1002 = vsel %vm626, %v998, 0.0
        %v1003 = vsel %vm627, %v999, 0.0
        %1004 = vrot.lane.b32.xlu0 %v986, 112
        %v1005 = vpop.permute.xlu0 %1004
        %1006 = vrot.lane.b32.xlu0 %v982, 112
        %v1007 = vpop.permute.xlu0 %1006
        %1008 = vrot.lane.b32.xlu0 %v987, 112
        %v1009 = vpop.permute.xlu0 %1008
        %v1010 = vsel %vm649, %v1005, %v1007
        %v1011 = vsel %vm649, %v1007, %v1009
        %v1014 = vsel %vm620, %v1010, 0.0
        %v1015 = vsel %vm621, %v1011, 0.0
        %1016 = vrot.lane.b32.xlu0 %v986, 110
        %v1017 = vpop.permute.xlu0 %1016
        %1018 = vrot.lane.b32.xlu0 %v982, 110
        %v1019 = vpop.permute.xlu0 %1018
        %1020 = vrot.lane.b32.xlu0 %v987, 110
        %v1021 = vpop.permute.xlu0 %1020
        %v1022 = vsel %vm662, %v1017, %v1019
        %v1023 = vsel %vm662, %v1019, %v1021
        %v1026 = vsel %vm626, %v1022, 0.0
        %v1027 = vsel %vm627, %v1023, 0.0
        %1028 = vrot.lane.b32.xlu0 %v986, 96
        %v1029 = vpop.permute.xlu0 %1028
        %1030 = vrot.lane.b32.xlu0 %v982, 96
        %v1031 = vpop.permute.xlu0 %1030
        %1032 = vrot.lane.b32.xlu0 %v987, 96
        %v1033 = vpop.permute.xlu0 %1032
        %v1034 = vsel %vm675, %v1029, %v1031
        %v1035 = vsel %vm675, %v1031, %v1033
        %v1038 = vsel %vm620, %v1034, 0.0
        %v1039 = vsel %vm621, %v1035, 0.0
        %1040 = vrot.lane.b32.xlu0 %v986, 94
        %v1041 = vpop.permute.xlu0 %1040
        %1042 = vrot.lane.b32.xlu0 %v982, 94
        %v1043 = vpop.permute.xlu0 %1042
        %1044 = vrot.lane.b32.xlu0 %v987, 94
        %v1045 = vpop.permute.xlu0 %1044
        %v1046 = vsel %vm688, %v1041, %v1043
        %v1047 = vsel %vm688, %v1043, %v1045
        %v1050 = vsel %vm626, %v1046, 0.0
        %v1051 = vsel %vm627, %v1047, 0.0
        %1052 = vrot.lane.b32.xlu0 %v986, 127
        %v1053 = vpop.permute.xlu0 %1052
        %1054 = vrot.lane.b32.xlu0 %v982, 127
        %v1055 = vpop.permute.xlu0 %1054
        %1056 = vrot.lane.b32.xlu0 %v987, 127
        %v1057 = vpop.permute.xlu0 %1056
        %v1058 = vsel %vm701, %v1053, %v1055
        %v1059 = vsel %vm701, %v1055, %v1057
        %1062 = vrot.lane.b32.xlu0 %v986, 111
        %v1063 = vpop.permute.xlu0 %1062
        %1064 = vrot.lane.b32.xlu0 %v982, 111
        %v1065 = vpop.permute.xlu0 %1064
        %1066 = vrot.lane.b32.xlu0 %v987, 111
        %v1067 = vpop.permute.xlu0 %1066
        %v1068 = vsel %vm712, %v1063, %v1065
        %v1069 = vsel %vm712, %v1065, %v1067
        %1072 = vrot.lane.b32.xlu0 %v986, 95
        %v1073 = vpop.permute.xlu0 %1072
        %1074 = vrot.lane.b32.xlu0 %v982, 95
        %v1075 = vpop.permute.xlu0 %1074
        %1076 = vrot.lane.b32.xlu0 %v987, 95
        %v1077 = vpop.permute.xlu0 %1076
        %v1078 = vsel %vm723, %v1073, %v1075
        %v1079 = vsel %vm723, %v1075, %v1077
        %v1082 = vld [vmem:[%s7] sm:$0xff]
        %v1083 = vpack.c.bf16 %v1082, %v1082
        %v1084 = vpack.c.bf16 %v1058, %v988
        %v1085 = vpack.c.bf16 %v1059, %v989
        %v1086 = vpack.c.bf16 %v1014, %v1002
        %v1087 = vpack.c.bf16 %v1015, %v1003
        %v1088 = vpack.c.bf16 %v1026, %v1068
        %v1089 = vpack.c.bf16 %v1027, %v1069
        %v1090 = vpack.c.bf16 %v1078, %v1038
        %v1091 = vpack.c.bf16 %v1079, %v1039
        %v1092 = vpack.c.bf16 %v1050, %v1050
        %v1093 = vpack.c.bf16 %v1051, %v1051
        %v1094 = vld [vmem:[%s8] sm:$0xff]
        %1096 = vset.pattern.permute.xlu0 0
        %1097 = vperm.xlu0 %1096, %v1094
        %v1098 = vpop.permute.xlu0 %1097
        %v1101 = vsel %vm746, %v1083, 0
        %v1104 = vsel %vm750, %v1092, 0
        %v1107 = vsel %vm750, %v1093, 0
        %1109 = vmatprep.subr.bf16.mxu0 %v1085
        %1110 = vmatpush1.bf16.msra.mxu0 %v1084
        %1111 = vmatprep.subr.bf16.mxu0 %v1087
        %1112 = vmatpush1.bf16.msra.mxu0 %v1086
        %1113 = vmatprep.subr.bf16.mxu0 %v1089
        %1114 = vmatpush1.bf16.msra.mxu0 %v1088
        %1115 = vmatprep.subr.bf16.mxu0 %v1091
        %1116 = vmatpush1.bf16.msra.mxu0 %v1090
        %1117 = vmatprep.subr.bf16.mxu0 %v1107
        %1118 = vmatpush1.bf16.msra.mxu0 %v1104
        %1119 = vmatprep.subr.bf16.mxu0 0
        %1120 = vmatpush1.bf16.msra.mxu0 0
        %1121 = vmatprep.subr.bf16.mxu0 0
        %1122 = vmatpush1.bf16.msra.mxu0 0
        %1123 = vmatprep.subr.bf16.mxu0 0
        %1124 = vmatpush1.bf16.msra.mxu0 0
        %1125 = vmatprep.subr.bf16.mxu0 0
        %1126 = vmatpush1.bf16.msra.mxu0 0
        %1127 = vmatprep.subr.bf16.mxu0 0
        %1128 = vmatpush1.bf16.msra.mxu0 0
        %1129 = vmatprep.subr.bf16.mxu0 0
        %1130 = vmatpush1.bf16.msra.mxu0 0
        %1131 = vmatprep.subr.bf16.mxu0 0
        %1132 = vmatpush1.bf16.msra.mxu0 0
        %1133 = vmatprep.subr.bf16.mxu0 0
        %1134 = vmatpush1.bf16.msra.mxu0 0
        %1135 = vmatprep.subr.bf16.mxu0 0
        %1136 = vmatpush1.bf16.msra.mxu0 0
        %1137 = vmatprep.subr.bf16.mxu0 0
        %1138 = vmatpush1.bf16.msra.mxu0 0
        %1139 = vmatprep.subr.bf16.mxu0 0
        %1140 = vmatpush1.bf16.msra.mxu0 0
        %1141 = vmatprep.mubr.bf16.mxu0 0
        %1142 = vmatmul.mubr.bf16.gmra.mrb[0].mxu0 %v1101
        %v1143 = vpop.f32.mrb[0].mxu0
        %v1144 = vadd.f32 %v1098, %v1143
        %v1145 = vpop.f32.mrb[0].mxu0
        %v1146 = vadd.f32 %v1098, %v1145
        %v1147 = vpop.f32.mrb[0].mxu0
        %v1148 = vpop.f32.mrb[0].mxu0
        %1149 = vdwg.mxu0
        %v1150 = vadd.f32 %v792, %v1144
        %v1151 = vadd.f32 %v794, %v1146
        %v1152 = vld [vmem:[%s502] sm:$0xff]
        %v1153 = vld [vmem:[%s502 + $0x8] sm:$0xff]
        %v1154 = vld [vmem:[%s502 + $0x10] sm:$0xff]
        %v1155 = vld [vmem:[%s502 + $0x18] sm:$0xff]
        %v1156 = vld [vmem:[%s502 + $0x20] sm:$0xff]
        %v1157 = vld [vmem:[%s502 + $0x28] sm:$0xff]
        %v1158 = vld [vmem:[%s502 + $0x30] sm:$0xff]
        %v1159 = vld [vmem:[%s502 + $0x38] sm:$0xff]
        %v1160 = vld [vmem:[#allocation5] sm:$0xff]
        %vm1161 = vcmask 64512
        %v1163 = vsel %vm1161, %v1152, 0
        %v1166 = vsel %vm1161, %v1153, 0
        %v1169 = vsel %vm1161, %v1154, 0
        %v1172 = vsel %vm1161, %v1155, 0
        %v1175 = vsel %vm1161, %v1156, 0
        %v1178 = vsel %vm1161, %v1157, 0
        %v1181 = vsel %vm1161, %v1158, 0
        %v1184 = vsel %vm1161, %v1159, 0
        %1186 = vmatprep.subr.mxu0 0.0
        %1187 = vmatpush1.msra.mxu0 %v1160
        %1188 = vmatprep.subr.mxu0 0.0
        %1189 = vmatpush1.msra.mxu0 0.0
        %1190 = vmatprep.subr.mxu0 0.0
        %1191 = vmatpush1.msra.mxu0 0.0
        %1192 = vmatprep.subr.mxu0 0.0
        %1193 = vmatpush1.msra.mxu0 0.0
        %1194 = vmatprep.subr.mxu0 0.0
        %1195 = vmatpush1.msra.mxu0 0.0
        %1196 = vmatprep.subr.mxu0 0.0
        %1197 = vmatpush1.msra.mxu0 0.0
        %1198 = vmatprep.subr.mxu0 0.0
        %1199 = vmatpush1.msra.mxu0 0.0
        %1200 = vmatprep.subr.mxu0 0.0
        %1201 = vmatpush1.msra.mxu0 0.0
        %1202 = vmatprep.subr.mxu0 0.0
        %1203 = vmatpush1.msra.mxu0 0.0
        %1204 = vmatprep.subr.mxu0 0.0
        %1205 = vmatpush1.msra.mxu0 0.0
        %1206 = vmatprep.subr.mxu0 0.0
        %1207 = vmatpush1.msra.mxu0 0.0
        %1208 = vmatprep.subr.mxu0 0.0
        %1209 = vmatpush1.msra.mxu0 0.0
        %1210 = vmatprep.subr.mxu0 0.0
        %1211 = vmatpush1.msra.mxu0 0.0
        %1212 = vmatprep.subr.mxu0 0.0
        %1213 = vmatpush1.msra.mxu0 0.0
        %1214 = vmatprep.subr.mxu0 0.0
        %1215 = vmatpush1.msra.mxu0 0.0
        %1216 = vmatprep.subr.mxu0 0.0
        %1217 = vmatpush1.msra.mxu0 0.0
        %1218 = vmatprep.subr.mxu0 0.0
        %1219 = vmatpush1.msra.mxu0 0.0
        %1220 = vmatprep.subr.mxu0 0.0
        %1221 = vmatpush1.msra.mxu0 0.0
        %1222 = vmatprep.subr.mxu0 0.0
        %1223 = vmatpush1.msra.mxu0 0.0
        %1224 = vmatprep.subr.mxu0 0.0
        %1225 = vmatpush1.msra.mxu0 0.0
        %1226 = vmatprep.subr.mxu0 0.0
        %1227 = vmatpush1.msra.mxu0 0.0
        %1228 = vmatprep.subr.mxu0 0.0
        %1229 = vmatpush1.msra.mxu0 0.0
        %1230 = vmatprep.subr.mxu0 0.0
        %1231 = vmatpush1.msra.mxu0 0.0
        %1232 = vmatprep.subr.mxu0 0.0
        %1233 = vmatpush1.msra.mxu0 0.0
        %1234 = vmatprep.subr.mxu0 0.0
        %1235 = vmatpush1.msra.mxu0 0.0
        %1236 = vmatprep.subr.mxu0 0.0
        %1237 = vmatpush1.msra.mxu0 0.0
        %1238 = vmatprep.subr.mxu0 0.0
        %1239 = vmatpush1.msra.mxu0 0.0
        %1240 = vmatprep.subr.mxu0 0.0
        %1241 = vmatpush1.msra.mxu0 0.0
        %1242 = vmatprep.subr.mxu0 0.0
        %1243 = vmatpush1.msra.mxu0 0.0
        %1244 = vmatprep.subr.mxu0 0.0
        %1245 = vmatpush1.msra.mxu0 0.0
        %1246 = vmatprep.subr.mxu0 0.0
        %1247 = vmatpush1.msra.mxu0 0.0
        %1248 = vmatprep.subr.mxu0 0.0
        %1249 = vmatpush1.msra.mxu0 0.0
        %1250 = vmatprep.mubr.f32.mxu0 0.0
        %1251 = vmatmul.mubr.f32.gmra.mrb[0].mxu0 %v1163
        %v1252 = vpop.f32.mrb[0].mxu0
        %v1253 = vadd.f32 0.0, %v1252
        %v1254 = vpop.f32.mrb[0].mxu0
        %1255 = vmatprep.mubr.f32.mxu0 0.0
        %1256 = vmatmul.mubr.f32.gmra.mrb[0].mxu0 %v1166
        %v1257 = vpop.f32.mrb[0].mxu0
        %v1258 = vadd.f32 0.0, %v1257
        %v1259 = vpop.f32.mrb[0].mxu0
        %1260 = vmatprep.mubr.f32.mxu0 0.0
        %1261 = vmatmul.mubr.f32.gmra.mrb[0].mxu0 %v1169
        %v1262 = vpop.f32.mrb[0].mxu0
        %v1263 = vadd.f32 0.0, %v1262
        %v1264 = vpop.f32.mrb[0].mxu0
        %1265 = vmatprep.mubr.f32.mxu0 0.0
        %1266 = vmatmul.mubr.f32.gmra.mrb[0].mxu0 %v1172
        %v1267 = vpop.f32.mrb[0].mxu0
        %v1268 = vadd.f32 0.0, %v1267
        %v1269 = vpop.f32.mrb[0].mxu0
        %1270 = vmatprep.mubr.f32.mxu0 0.0
        %1271 = vmatmul.mubr.f32.gmra.mrb[0].mxu0 %v1175
        %v1272 = vpop.f32.mrb[0].mxu0
        %v1273 = vadd.f32 0.0, %v1272
        %v1274 = vpop.f32.mrb[0].mxu0
        %1275 = vmatprep.mubr.f32.mxu0 0.0
        %1276 = vmatmul.mubr.f32.gmra.mrb[0].mxu0 %v1178
        %v1277 = vpop.f32.mrb[0].mxu0
        %v1278 = vadd.f32 0.0, %v1277
        %v1279 = vpop.f32.mrb[0].mxu0
        %1280 = vmatprep.mubr.f32.mxu0 0.0
        %1281 = vmatmul.mubr.f32.gmra.mrb[0].mxu0 %v1181
        %v1282 = vpop.f32.mrb[0].mxu0
        %v1283 = vadd.f32 0.0, %v1282
        %v1284 = vpop.f32.mrb[0].mxu0
        %1285 = vmatprep.mubr.f32.mxu0 0.0
        %1286 = vmatmul.mubr.f32.gmra.mrb[0].mxu0 %v1184
        %v1287 = vpop.f32.mrb[0].mxu0
        %v1288 = vadd.f32 0.0, %v1287
        %v1289 = vpop.f32.mrb[0].mxu0
        %1290 = vdwg.mxu0
        %v1291 = vmul.f32 %v1253, 0.75
        %v1292 = vmul.f32 %v1258, 0.25
        %v1293 = vadd.f32 %v1291, %v1292
        %v1294 = vmul.f32 %v1253, 0.25
        %v1295 = vmul.f32 %v1258, 0.75
        %v1296 = vadd.f32 %v1294, %v1295
        %v1297 = vmul.f32 %v1263, 0.25
        %v1298 = vadd.f32 %v1295, %v1297
        %v1299 = vmul.f32 %v1263, 0.75
        %v1300 = vadd.f32 %v1292, %v1299
        %v1301 = vmul.f32 %v1268, 0.25
        %v1302 = vadd.f32 %v1299, %v1301
        %v1303 = vmul.f32 %v1268, 0.75
        %v1304 = vadd.f32 %v1297, %v1303
        %v1305 = vmul.f32 %v1273, 0.25
        %v1306 = vadd.f32 %v1303, %v1305
        %v1307 = vmul.f32 %v1273, 0.75
        %v1308 = vadd.f32 %v1301, %v1307
        %v1309 = vmul.f32 %v1278, 0.25
        %v1310 = vadd.f32 %v1307, %v1309
        %v1311 = vmul.f32 %v1278, 0.75
        %v1312 = vadd.f32 %v1305, %v1311
        %v1313 = vmul.f32 %v1283, 0.25
        %v1314 = vadd.f32 %v1311, %v1313
        %v1315 = vmul.f32 %v1283, 0.75
        %v1316 = vadd.f32 %v1309, %v1315
        %v1317 = vmul.f32 %v1288, 0.25
        %v1318 = vadd.f32 %v1315, %v1317
        %v1319 = vmul.f32 %v1288, 0.75
        %v1320 = vadd.f32 %v1313, %v1319
        %1322 = vrot.lane.b32.xlu0 %v1293, 16
        %v1323 = vpop.permute.xlu0 %1322
        %1326 = vrot.lane.b32.xlu0 %v1296, 32
        %v1327 = vpop.permute.xlu0 %1326
        %1330 = vrot.lane.b32.xlu0 %v1298, 48
        %v1331 = vpop.permute.xlu0 %1330
        %1334 = vrot.lane.b32.xlu0 %v1300, 64
        %v1335 = vpop.permute.xlu0 %1334
        %1338 = vrot.lane.b32.xlu0 %v1302, 80
        %v1339 = vpop.permute.xlu0 %1338
        %1342 = vrot.lane.b32.xlu0 %v1304, 96
        %v1343 = vpop.permute.xlu0 %1342
        %1346 = vrot.lane.b32.xlu0 %v1306, 112
        %v1347 = vpop.permute.xlu0 %1346
        %1350 = vrot.lane.b32.xlu0 %v1310, 16
        %v1351 = vpop.permute.xlu0 %1350
        %1354 = vrot.lane.b32.xlu0 %v1312, 32
        %v1355 = vpop.permute.xlu0 %1354
        %1358 = vrot.lane.b32.xlu0 %v1314, 48
        %v1359 = vpop.permute.xlu0 %1358
        %1362 = vrot.lane.b32.xlu0 %v1316, 64
        %v1363 = vpop.permute.xlu0 %1362
        %1366 = vrot.lane.b32.xlu0 %v1318, 80
        %v1367 = vpop.permute.xlu0 %1366
        %1370 = vrot.lane.b32.xlu0 %v1320, 96
        %v1371 = vpop.permute.xlu0 %1370
        %1374 = vrot.lane.b32.xlu0 %v1288, 112
        %v1375 = vpop.permute.xlu0 %1374
        %vm1377 = vcmask 130048
        %v1378 = vsel %vm1377, %v1253, %v1323
        %vm1379 = vcmask 261120
        %v1380 = vsel %vm1379, %v1378, %v1327
        %vm1381 = vcmask 392192
        %v1382 = vsel %vm1381, %v1380, %v1331
        %vm1383 = vcmask 523264
        %v1384 = vsel %vm1383, %v1382, %v1335
        %vm1385 = vcmask 654336
        %v1386 = vsel %vm1385, %v1384, %v1339
        %v1387 = vsel %vm675, %v1386, %v1343
        %v1388 = vsel %vm649, %v1387, %v1347
        %v1389 = vsel %vm1377, %v1308, %v1351
        %v1390 = vsel %vm1379, %v1389, %v1355
        %v1391 = vsel %vm1381, %v1390, %v1359
        %v1392 = vsel %vm1383, %v1391, %v1363
        %v1393 = vsel %vm1385, %v1392, %v1367
        %v1394 = vsel %vm675, %v1393, %v1371
        %v1395 = vsel %vm649, %v1394, %v1375
        %v1396 = vadd.f32 %v1150, %v1388
        %v1397 = vadd.f32 %v1151, %v1395
        %v1398 = vmax.f32 %v1396, 0.0
        %v1399 = vmax.f32 %v1397, 0.0
        %1402 = vrot.lane.b32.xlu0 %v1398, 17
        %v1403 = vpop.permute.xlu0 %1402
        %1404 = vrot.lane.b32.xlu0 %v1399, 17
        %v1405 = vpop.permute.xlu0 %1404
        %v1406 = vsel %vm611, %v1403, %v1405
        %v1410 = vsel %vm611, 0.0, %v1403
        %v1411 = vsel %vm611, %v1405, 0.0
        %v1412 = vsel %vm620, %v1410, 0.0
        %v1413 = vsel %vm621, %v1406, 0.0
        %1416 = vrot.lane.b32.xlu0 %v1410, 126
        %v1417 = vpop.permute.xlu0 %1416
        %1418 = vrot.lane.b32.xlu0 %v1406, 126
        %v1419 = vpop.permute.xlu0 %1418
        %1420 = vrot.lane.b32.xlu0 %v1411, 126
        %v1421 = vpop.permute.xlu0 %1420
        %v1422 = vsel %vm636, %v1417, %v1419
        %v1423 = vsel %vm636, %v1419, %v1421
        %v1426 = vsel %vm626, %v1422, 0.0
        %v1427 = vsel %vm627, %v1423, 0.0
        %1428 = vrot.lane.b32.xlu0 %v1410, 112
        %v1429 = vpop.permute.xlu0 %1428
        %1430 = vrot.lane.b32.xlu0 %v1406, 112
        %v1431 = vpop.permute.xlu0 %1430
        %1432 = vrot.lane.b32.xlu0 %v1411, 112
        %v1433 = vpop.permute.xlu0 %1432
        %v1434 = vsel %vm649, %v1429, %v1431
        %v1435 = vsel %vm649, %v1431, %v1433
        %v1438 = vsel %vm620, %v1434, 0.0
        %v1439 = vsel %vm621, %v1435, 0.0
        %1440 = vrot.lane.b32.xlu0 %v1410, 110
        %v1441 = vpop.permute.xlu0 %1440
        %1442 = vrot.lane.b32.xlu0 %v1406, 110
        %v1443 = vpop.permute.xlu0 %1442
        %1444 = vrot.lane.b32.xlu0 %v1411, 110
        %v1445 = vpop.permute.xlu0 %1444
        %v1446 = vsel %vm662, %v1441, %v1443
        %v1447 = vsel %vm662, %v1443, %v1445
        %v1450 = vsel %vm626, %v1446, 0.0
        %v1451 = vsel %vm627, %v1447, 0.0
        %1452 = vrot.lane.b32.xlu0 %v1410, 96
        %v1453 = vpop.permute.xlu0 %1452
        %1454 = vrot.lane.b32.xlu0 %v1406, 96
        %v1455 = vpop.permute.xlu0 %1454
        %1456 = vrot.lane.b32.xlu0 %v1411, 96
        %v1457 = vpop.permute.xlu0 %1456
        %v1458 = vsel %vm675, %v1453, %v1455
        %v1459 = vsel %vm675, %v1455, %v1457
        %v1462 = vsel %vm620, %v1458, 0.0
        %v1463 = vsel %vm621, %v1459, 0.0
        %1464 = vrot.lane.b32.xlu0 %v1410, 94
        %v1465 = vpop.permute.xlu0 %1464
        %1466 = vrot.lane.b32.xlu0 %v1406, 94
        %v1467 = vpop.permute.xlu0 %1466
        %1468 = vrot.lane.b32.xlu0 %v1411, 94
        %v1469 = vpop.permute.xlu0 %1468
        %v1470 = vsel %vm688, %v1465, %v1467
        %v1471 = vsel %vm688, %v1467, %v1469
        %v1474 = vsel %vm626, %v1470, 0.0
        %v1475 = vsel %vm627, %v1471, 0.0
        %1476 = vrot.lane.b32.xlu0 %v1410, 127
        %v1477 = vpop.permute.xlu0 %1476
        %1478 = vrot.lane.b32.xlu0 %v1406, 127
        %v1479 = vpop.permute.xlu0 %1478
        %1480 = vrot.lane.b32.xlu0 %v1411, 127
        %v1481 = vpop.permute.xlu0 %1480
        %v1482 = vsel %vm701, %v1477, %v1479
        %v1483 = vsel %vm701, %v1479, %v1481
        %1486 = vrot.lane.b32.xlu0 %v1410, 111
        %v1487 = vpop.permute.xlu0 %1486
        %1488 = vrot.lane.b32.xlu0 %v1406, 111
        %v1489 = vpop.permute.xlu0 %1488
        %1490 = vrot.lane.b32.xlu0 %v1411, 111
        %v1491 = vpop.permute.xlu0 %1490
        %v1492 = vsel %vm712, %v1487, %v1489
        %v1493 = vsel %vm712, %v1489, %v1491
        %1496 = vrot.lane.b32.xlu0 %v1410, 95
        %v1497 = vpop.permute.xlu0 %1496
        %1498 = vrot.lane.b32.xlu0 %v1406, 95
        %v1499 = vpop.permute.xlu0 %1498
        %1500 = vrot.lane.b32.xlu0 %v1411, 95
        %v1501 = vpop.permute.xlu0 %1500
        %v1502 = vsel %vm723, %v1497, %v1499
        %v1503 = vsel %vm723, %v1499, %v1501
        %v1506 = vld [vmem:[%s9] sm:$0xff]
        %v1507 = vld [vmem:[%s9 + $0x8] sm:$0xff]
        %v1508 = vpack.c.bf16 %v1507, %v1506
        %v1509 = vpack.c.bf16 %v1482, %v1412
        %v1510 = vpack.c.bf16 %v1483, %v1413
        %v1511 = vpack.c.bf16 %v1438, %v1426
        %v1512 = vpack.c.bf16 %v1439, %v1427
        %v1513 = vpack.c.bf16 %v1450, %v1492
        %v1514 = vpack.c.bf16 %v1451, %v1493
        %v1515 = vpack.c.bf16 %v1502, %v1462
        %v1516 = vpack.c.bf16 %v1503, %v1463
        %v1517 = vpack.c.bf16 %v1474, %v1474
        %v1518 = vpack.c.bf16 %v1475, %v1475
        %v1519 = vld [vmem:[%s10] sm:$0xff]
        %v1520 = vld [vmem:[%s10 + $0x8] sm:$0xff]
        %1522 = vset.pattern.permute.xlu0 0
        %1523 = vperm.xlu0 %1522, %v1519
        %v1524 = vpop.permute.xlu0 %1523
        %1527 = vset.pattern.permute.xlu0 0
        %1528 = vperm.xlu0 %1527, %v1520
        %v1529 = vpop.permute.xlu0 %1528
        %v1532 = vsel %vm746, %v1508, 0
        %v1535 = vsel %vm750, %v1517, 0
        %v1538 = vsel %vm750, %v1518, 0
        %1540 = vmatprep.subr.bf16.mxu0 %v1510
        %1541 = vmatpush1.bf16.msra.mxu0 %v1509
        %1542 = vmatprep.subr.bf16.mxu0 %v1512
        %1543 = vmatpush1.bf16.msra.mxu0 %v1511
        %1544 = vmatprep.subr.bf16.mxu0 %v1514
        %1545 = vmatpush1.bf16.msra.mxu0 %v1513
        %1546 = vmatprep.subr.bf16.mxu0 %v1516
        %1547 = vmatpush1.bf16.msra.mxu0 %v1515
        %1548 = vmatprep.subr.bf16.mxu0 %v1538
        %1549 = vmatpush1.bf16.msra.mxu0 %v1535
        %1550 = vmatprep.subr.bf16.mxu0 0
        %1551 = vmatpush1.bf16.msra.mxu0 0
        %1552 = vmatprep.subr.bf16.mxu0 0
        %1553 = vmatpush1.bf16.msra.mxu0 0
        %1554 = vmatprep.subr.bf16.mxu0 0
        %1555 = vmatpush1.bf16.msra.mxu0 0
        %1556 = vmatprep.subr.bf16.mxu0 0
        %1557 = vmatpush1.bf16.msra.mxu0 0
        %1558 = vmatprep.subr.bf16.mxu0 0
        %1559 = vmatpush1.bf16.msra.mxu0 0
        %1560 = vmatprep.subr.bf16.mxu0 0
        %1561 = vmatpush1.bf16.msra.mxu0 0
        %1562 = vmatprep.subr.bf16.mxu0 0
        %1563 = vmatpush1.bf16.msra.mxu0 0
        %1564 = vmatprep.subr.bf16.mxu0 0
        %1565 = vmatpush1.bf16.msra.mxu0 0
        %1566 = vmatprep.subr.bf16.mxu0 0
        %1567 = vmatpush1.bf16.msra.mxu0 0
        %1568 = vmatprep.subr.bf16.mxu0 0
        %1569 = vmatpush1.bf16.msra.mxu0 0
        %1570 = vmatprep.subr.bf16.mxu0 0
        %1571 = vmatpush1.bf16.msra.mxu0 0
        %1572 = vmatprep.mubr.bf16.mxu0 0
        %1573 = vmatmul.mubr.bf16.gmra.mrb[0].mxu0 %v1532
        %v1574 = vpop.f32.mrb[0].mxu0
        %v1575 = vadd.f32 %v1524, %v1574
        %v1576 = vpop.f32.mrb[0].mxu0
        %v1577 = vadd.f32 %v1524, %v1576
        %v1578 = vpop.f32.mrb[0].mxu0
        %v1579 = vadd.f32 %v1529, %v1578
        %v1580 = vpop.f32.mrb[0].mxu0
        %v1581 = vadd.f32 %v1529, %v1580
        %1582 = vdwg.mxu0
        %1585 = vrot.lane.b32.xlu0 %v1396, 17
        %v1586 = vpop.permute.xlu0 %1585
        %1587 = vrot.lane.b32.xlu0 %v1397, 17
        %v1588 = vpop.permute.xlu0 %1587
        %v1589 = vsel %vm611, %v1586, %v1588
        %v1593 = vsel %vm611, 0.0, %v1586
        %v1594 = vsel %vm611, %v1588, 0.0
        %v1595 = vsel %vm620, %v1593, 0.0
        %v1596 = vsel %vm621, %v1589, 0.0
        %1599 = vrot.lane.b32.xlu0 %v1593, 126
        %v1600 = vpop.permute.xlu0 %1599
        %1601 = vrot.lane.b32.xlu0 %v1589, 126
        %v1602 = vpop.permute.xlu0 %1601
        %1603 = vrot.lane.b32.xlu0 %v1594, 126
        %v1604 = vpop.permute.xlu0 %1603
        %v1605 = vsel %vm636, %v1600, %v1602
        %v1606 = vsel %vm636, %v1602, %v1604
        %v1609 = vsel %vm626, %v1605, 0.0
        %v1610 = vsel %vm627, %v1606, 0.0
        %1611 = vrot.lane.b32.xlu0 %v1593, 112
        %v1612 = vpop.permute.xlu0 %1611
        %1613 = vrot.lane.b32.xlu0 %v1589, 112
        %v1614 = vpop.permute.xlu0 %1613
        %1615 = vrot.lane.b32.xlu0 %v1594, 112
        %v1616 = vpop.permute.xlu0 %1615
        %v1617 = vsel %vm649, %v1612, %v1614
        %v1618 = vsel %vm649, %v1614, %v1616
        %v1621 = vsel %vm620, %v1617, 0.0
        %v1622 = vsel %vm621, %v1618, 0.0
        %1623 = vrot.lane.b32.xlu0 %v1593, 110
        %v1624 = vpop.permute.xlu0 %1623
        %1625 = vrot.lane.b32.xlu0 %v1589, 110
        %v1626 = vpop.permute.xlu0 %1625
        %1627 = vrot.lane.b32.xlu0 %v1594, 110
        %v1628 = vpop.permute.xlu0 %1627
        %v1629 = vsel %vm662, %v1624, %v1626
        %v1630 = vsel %vm662, %v1626, %v1628
        %v1633 = vsel %vm626, %v1629, 0.0
        %v1634 = vsel %vm627, %v1630, 0.0
        %1635 = vrot.lane.b32.xlu0 %v1593, 96
        %v1636 = vpop.permute.xlu0 %1635
        %1637 = vrot.lane.b32.xlu0 %v1589, 96
        %v1638 = vpop.permute.xlu0 %1637
        %1639 = vrot.lane.b32.xlu0 %v1594, 96
        %v1640 = vpop.permute.xlu0 %1639
        %v1641 = vsel %vm675, %v1636, %v1638
        %v1642 = vsel %vm675, %v1638, %v1640
        %v1645 = vsel %vm620, %v1641, 0.0
        %v1646 = vsel %vm621, %v1642, 0.0
        %1647 = vrot.lane.b32.xlu0 %v1593, 94
        %v1648 = vpop.permute.xlu0 %1647
        %1649 = vrot.lane.b32.xlu0 %v1589, 94
        %v1650 = vpop.permute.xlu0 %1649
        %1651 = vrot.lane.b32.xlu0 %v1594, 94
        %v1652 = vpop.permute.xlu0 %1651
        %v1653 = vsel %vm688, %v1648, %v1650
        %v1654 = vsel %vm688, %v1650, %v1652
        %v1657 = vsel %vm626, %v1653, 0.0
        %v1658 = vsel %vm627, %v1654, 0.0
        %1659 = vrot.lane.b32.xlu0 %v1593, 127
        %v1660 = vpop.permute.xlu0 %1659
        %1661 = vrot.lane.b32.xlu0 %v1589, 127
        %v1662 = vpop.permute.xlu0 %1661
        %1663 = vrot.lane.b32.xlu0 %v1594, 127
        %v1664 = vpop.permute.xlu0 %1663
        %v1665 = vsel %vm701, %v1660, %v1662
        %v1666 = vsel %vm701, %v1662, %v1664
        %1669 = vrot.lane.b32.xlu0 %v1593, 111
        %v1670 = vpop.permute.xlu0 %1669
        %1671 = vrot.lane.b32.xlu0 %v1589, 111
        %v1672 = vpop.permute.xlu0 %1671
        %1673 = vrot.lane.b32.xlu0 %v1594, 111
        %v1674 = vpop.permute.xlu0 %1673
        %v1675 = vsel %vm712, %v1670, %v1672
        %v1676 = vsel %vm712, %v1672, %v1674
        %1679 = vrot.lane.b32.xlu0 %v1593, 95
        %v1680 = vpop.permute.xlu0 %1679
        %1681 = vrot.lane.b32.xlu0 %v1589, 95
        %v1682 = vpop.permute.xlu0 %1681
        %1683 = vrot.lane.b32.xlu0 %v1594, 95
        %v1684 = vpop.permute.xlu0 %1683
        %v1685 = vsel %vm723, %v1680, %v1682
        %v1686 = vsel %vm723, %v1682, %v1684
        %v1689 = vld [vmem:[%s11] sm:$0xff]
        %v1690 = vld [vmem:[%s11 + $0x8] sm:$0xff]
        %v1691 = vpack.c.bf16 %v1690, %v1689
        %v1692 = vpack.c.bf16 %v1665, %v1595
        %v1693 = vpack.c.bf16 %v1666, %v1596
        %v1694 = vpack.c.bf16 %v1621, %v1609
        %v1695 = vpack.c.bf16 %v1622, %v1610
        %v1696 = vpack.c.bf16 %v1633, %v1675
        %v1697 = vpack.c.bf16 %v1634, %v1676
        %v1698 = vpack.c.bf16 %v1685, %v1645
        %v1699 = vpack.c.bf16 %v1686, %v1646
        %v1700 = vpack.c.bf16 %v1657, %v1657
        %v1701 = vpack.c.bf16 %v1658, %v1658
        %v1702 = vld [vmem:[%s12] sm:$0xff]
        %v1703 = vld [vmem:[%s12 + $0x8] sm:$0xff]
        %1705 = vset.pattern.permute.xlu0 0
        %1706 = vperm.xlu0 %1705, %v1702
        %v1707 = vpop.permute.xlu0 %1706
        %1710 = vset.pattern.permute.xlu0 0
        %1711 = vperm.xlu0 %1710, %v1703
        %v1712 = vpop.permute.xlu0 %1711
        %v1715 = vsel %vm746, %v1691, 0
        %v1718 = vsel %vm750, %v1700, 0
        %v1721 = vsel %vm750, %v1701, 0
        %1723 = vmatprep.subr.bf16.mxu0 %v1693
        %1724 = vmatpush1.bf16.msra.mxu0 %v1692
        %1725 = vmatprep.subr.bf16.mxu0 %v1695
        %1726 = vmatpush1.bf16.msra.mxu0 %v1694
        %1727 = vmatprep.subr.bf16.mxu0 %v1697
        %1728 = vmatpush1.bf16.msra.mxu0 %v1696
        %1729 = vmatprep.subr.bf16.mxu0 %v1699
        %1730 = vmatpush1.bf16.msra.mxu0 %v1698
        %1731 = vmatprep.subr.bf16.mxu0 %v1721
        %1732 = vmatpush1.bf16.msra.mxu0 %v1718
        %1733 = vmatprep.subr.bf16.mxu0 0
        %1734 = vmatpush1.bf16.msra.mxu0 0
        %1735 = vmatprep.subr.bf16.mxu0 0
        %1736 = vmatpush1.bf16.msra.mxu0 0
        %1737 = vmatprep.subr.bf16.mxu0 0
        %1738 = vmatpush1.bf16.msra.mxu0 0
        %1739 = vmatprep.subr.bf16.mxu0 0
        %1740 = vmatpush1.bf16.msra.mxu0 0
        %1741 = vmatprep.subr.bf16.mxu0 0
        %1742 = vmatpush1.bf16.msra.mxu0 0
        %1743 = vmatprep.subr.bf16.mxu0 0
        %1744 = vmatpush1.bf16.msra.mxu0 0
        %1745 = vmatprep.subr.bf16.mxu0 0
        %1746 = vmatpush1.bf16.msra.mxu0 0
        %1747 = vmatprep.subr.bf16.mxu0 0
        %1748 = vmatpush1.bf16.msra.mxu0 0
        %1749 = vmatprep.subr.bf16.mxu0 0
        %1750 = vmatpush1.bf16.msra.mxu0 0
        %1751 = vmatprep.subr.bf16.mxu0 0
        %1752 = vmatpush1.bf16.msra.mxu0 0
        %1753 = vmatprep.subr.bf16.mxu0 0
        %1754 = vmatpush1.bf16.msra.mxu0 0
        %1755 = vmatprep.mubr.bf16.mxu0 0
        %1756 = vmatmul.mubr.bf16.gmra.mrb[0].mxu0 %v1715
        %v1757 = vpop.f32.mrb[0].mxu0
        %v1758 = vadd.f32 %v1707, %v1757
        %v1759 = vpop.f32.mrb[0].mxu0
        %v1760 = vadd.f32 %v1707, %v1759
        %v1761 = vpop.f32.mrb[0].mxu0
        %v1762 = vadd.f32 %v1712, %v1761
        %v1763 = vpop.f32.mrb[0].mxu0
        %v1764 = vadd.f32 %v1712, %v1763
        %1765 = vdwg.mxu0
        %v1766 = vmax.f32 %v1575, 0.0
        %v1767 = vmax.f32 %v1577, 0.0
        %v1768 = vmax.f32 %v1579, 0.0
        %v1769 = vmax.f32 %v1581, 0.0
        %1774 = vrot.lane.b32.xlu0 %v1766, 17
        %v1775 = vpop.permute.xlu0 %1774
        %1776 = vrot.lane.b32.xlu0 %v1767, 17
        %v1777 = vpop.permute.xlu0 %1776
        %1778 = vrot.lane.b32.xlu0 %v1768, 17
        %v1779 = vpop.permute.xlu0 %1778
        %1780 = vrot.lane.b32.xlu0 %v1769, 17
        %v1781 = vpop.permute.xlu0 %1780
        %v1782 = vsel %vm611, %v1775, %v1777
        %v1783 = vsel %vm611, %v1779, %v1781
        %v1790 = vsel %vm611, 0.0, %v1775
        %v1791 = vsel %vm611, 0.0, %v1779
        %v1792 = vsel %vm611, %v1777, 0.0
        %v1793 = vsel %vm611, %v1781, 0.0
        %v1794 = vsel %vm620, %v1790, 0.0
        %v1795 = vsel %vm621, %v1782, 0.0
        %v1796 = vsel %vm620, %v1791, 0.0
        %v1797 = vsel %vm621, %v1783, 0.0
        %1802 = vrot.lane.b32.xlu0 %v1790, 126
        %v1803 = vpop.permute.xlu0 %1802
        %1804 = vrot.lane.b32.xlu0 %v1782, 126
        %v1805 = vpop.permute.xlu0 %1804
        %1806 = vrot.lane.b32.xlu0 %v1792, 126
        %v1807 = vpop.permute.xlu0 %1806
        %1808 = vrot.lane.b32.xlu0 %v1791, 126
        %v1809 = vpop.permute.xlu0 %1808
        %1810 = vrot.lane.b32.xlu0 %v1783, 126
        %v1811 = vpop.permute.xlu0 %1810
        %1812 = vrot.lane.b32.xlu0 %v1793, 126
        %v1813 = vpop.permute.xlu0 %1812
        %v1814 = vsel %vm636, %v1803, %v1805
        %v1815 = vsel %vm636, %v1805, %v1807
        %v1816 = vsel %vm636, %v1809, %v1811
        %v1817 = vsel %vm636, %v1811, %v1813
        %v1822 = vsel %vm626, %v1814, 0.0
        %v1823 = vsel %vm627, %v1815, 0.0
        %v1824 = vsel %vm626, %v1816, 0.0
        %v1825 = vsel %vm627, %v1817, 0.0
        %1826 = vrot.lane.b32.xlu0 %v1790, 112
        %v1827 = vpop.permute.xlu0 %1826
        %1828 = vrot.lane.b32.xlu0 %v1782, 112
        %v1829 = vpop.permute.xlu0 %1828
        %1830 = vrot.lane.b32.xlu0 %v1792, 112
        %v1831 = vpop.permute.xlu0 %1830
        %1832 = vrot.lane.b32.xlu0 %v1791, 112
        %v1833 = vpop.permute.xlu0 %1832
        %1834 = vrot.lane.b32.xlu0 %v1783, 112
        %v1835 = vpop.permute.xlu0 %1834
        %1836 = vrot.lane.b32.xlu0 %v1793, 112
        %v1837 = vpop.permute.xlu0 %1836
        %v1838 = vsel %vm649, %v1827, %v1829
        %v1839 = vsel %vm649, %v1829, %v1831
        %v1840 = vsel %vm649, %v1833, %v1835
        %v1841 = vsel %vm649, %v1835, %v1837
        %v1846 = vsel %vm620, %v1838, 0.0
        %v1847 = vsel %vm621, %v1839, 0.0
        %v1848 = vsel %vm620, %v1840, 0.0
        %v1849 = vsel %vm621, %v1841, 0.0
        %1850 = vrot.lane.b32.xlu0 %v1790, 110
        %v1851 = vpop.permute.xlu0 %1850
        %1852 = vrot.lane.b32.xlu0 %v1782, 110
        %v1853 = vpop.permute.xlu0 %1852
        %1854 = vrot.lane.b32.xlu0 %v1792, 110
        %v1855 = vpop.permute.xlu0 %1854
        %1856 = vrot.lane.b32.xlu0 %v1791, 110
        %v1857 = vpop.permute.xlu0 %1856
        %1858 = vrot.lane.b32.xlu0 %v1783, 110
        %v1859 = vpop.permute.xlu0 %1858
        %1860 = vrot.lane.b32.xlu0 %v1793, 110
        %v1861 = vpop.permute.xlu0 %1860
        %v1862 = vsel %vm662, %v1851, %v1853
        %v1863 = vsel %vm662, %v1853, %v1855
        %v1864 = vsel %vm662, %v1857, %v1859
        %v1865 = vsel %vm662, %v1859, %v1861
        %v1870 = vsel %vm626, %v1862, 0.0
        %v1871 = vsel %vm627, %v1863, 0.0
        %v1872 = vsel %vm626, %v1864, 0.0
        %v1873 = vsel %vm627, %v1865, 0.0
        %1874 = vrot.lane.b32.xlu0 %v1790, 96
        %v1875 = vpop.permute.xlu0 %1874
        %1876 = vrot.lane.b32.xlu0 %v1782, 96
        %v1877 = vpop.permute.xlu0 %1876
        %1878 = vrot.lane.b32.xlu0 %v1792, 96
        %v1879 = vpop.permute.xlu0 %1878
        %1880 = vrot.lane.b32.xlu0 %v1791, 96
        %v1881 = vpop.permute.xlu0 %1880
        %1882 = vrot.lane.b32.xlu0 %v1783, 96
        %v1883 = vpop.permute.xlu0 %1882
        %1884 = vrot.lane.b32.xlu0 %v1793, 96
        %v1885 = vpop.permute.xlu0 %1884
        %v1886 = vsel %vm675, %v1875, %v1877
        %v1887 = vsel %vm675, %v1877, %v1879
        %v1888 = vsel %vm675, %v1881, %v1883
        %v1889 = vsel %vm675, %v1883, %v1885
        %v1894 = vsel %vm620, %v1886, 0.0
        %v1895 = vsel %vm621, %v1887, 0.0
        %v1896 = vsel %vm620, %v1888, 0.0
        %v1897 = vsel %vm621, %v1889, 0.0
        %1898 = vrot.lane.b32.xlu0 %v1790, 94
        %v1899 = vpop.permute.xlu0 %1898
        %1900 = vrot.lane.b32.xlu0 %v1782, 94
        %v1901 = vpop.permute.xlu0 %1900
        %1902 = vrot.lane.b32.xlu0 %v1792, 94
        %v1903 = vpop.permute.xlu0 %1902
        %1904 = vrot.lane.b32.xlu0 %v1791, 94
        %v1905 = vpop.permute.xlu0 %1904
        %1906 = vrot.lane.b32.xlu0 %v1783, 94
        %v1907 = vpop.permute.xlu0 %1906
        %1908 = vrot.lane.b32.xlu0 %v1793, 94
        %v1909 = vpop.permute.xlu0 %1908
        %v1910 = vsel %vm688, %v1899, %v1901
        %v1911 = vsel %vm688, %v1901, %v1903
        %v1912 = vsel %vm688, %v1905, %v1907
        %v1913 = vsel %vm688, %v1907, %v1909
        %v1918 = vsel %vm626, %v1910, 0.0
        %v1919 = vsel %vm627, %v1911, 0.0
        %v1920 = vsel %vm626, %v1912, 0.0
        %v1921 = vsel %vm627, %v1913, 0.0
        %1922 = vrot.lane.b32.xlu0 %v1790, 127
        %v1923 = vpop.permute.xlu0 %1922
        %1924 = vrot.lane.b32.xlu0 %v1782, 127
        %v1925 = vpop.permute.xlu0 %1924
        %1926 = vrot.lane.b32.xlu0 %v1792, 127
        %v1927 = vpop.permute.xlu0 %1926
        %1928 = vrot.lane.b32.xlu0 %v1791, 127
        %v1929 = vpop.permute.xlu0 %1928
        %1930 = vrot.lane.b32.xlu0 %v1783, 127
        %v1931 = vpop.permute.xlu0 %1930
        %1932 = vrot.lane.b32.xlu0 %v1793, 127
        %v1933 = vpop.permute.xlu0 %1932
        %v1934 = vsel %vm701, %v1923, %v1925
        %v1935 = vsel %vm701, %v1925, %v1927
        %v1936 = vsel %vm701, %v1929, %v1931
        %v1937 = vsel %vm701, %v1931, %v1933
        %1942 = vrot.lane.b32.xlu0 %v1790, 111
        %v1943 = vpop.permute.xlu0 %1942
        %1944 = vrot.lane.b32.xlu0 %v1782, 111
        %v1945 = vpop.permute.xlu0 %1944
        %1946 = vrot.lane.b32.xlu0 %v1792, 111
        %v1947 = vpop.permute.xlu0 %1946
        %1948 = vrot.lane.b32.xlu0 %v1791, 111
        %v1949 = vpop.permute.xlu0 %1948
        %1950 = vrot.lane.b32.xlu0 %v1783, 111
        %v1951 = vpop.permute.xlu0 %1950
        %1952 = vrot.lane.b32.xlu0 %v1793, 111
        %v1953 = vpop.permute.xlu0 %1952
        %v1954 = vsel %vm712, %v1943, %v1945
        %v1955 = vsel %vm712, %v1945, %v1947
        %v1956 = vsel %vm712, %v1949, %v1951
        %v1957 = vsel %vm712, %v1951, %v1953
        %1962 = vrot.lane.b32.xlu0 %v1790, 95
        %v1963 = vpop.permute.xlu0 %1962
        %1964 = vrot.lane.b32.xlu0 %v1782, 95
        %v1965 = vpop.permute.xlu0 %1964
        %1966 = vrot.lane.b32.xlu0 %v1792, 95
        %v1967 = vpop.permute.xlu0 %1966
        %1968 = vrot.lane.b32.xlu0 %v1791, 95
        %v1969 = vpop.permute.xlu0 %1968
        %1970 = vrot.lane.b32.xlu0 %v1783, 95
        %v1971 = vpop.permute.xlu0 %1970
        %1972 = vrot.lane.b32.xlu0 %v1793, 95
        %v1973 = vpop.permute.xlu0 %1972
        %v1974 = vsel %vm723, %v1963, %v1965
        %v1975 = vsel %vm723, %v1965, %v1967
        %v1976 = vsel %vm723, %v1969, %v1971
        %v1977 = vsel %vm723, %v1971, %v1973
        %v1982 = vld [vmem:[%s13] sm:$0xff]
        %v1983 = vld [vmem:[%s13 + $0x8] sm:$0xff]
        %v1984 = vld [vmem:[%s13 + $0x10] sm:$0xff]
        %v1985 = vld [vmem:[%s13 + $0x18] sm:$0xff]
        %v1986 = vpack.c.bf16 %v1984, %v1982
        %v1987 = vpack.c.bf16 %v1985, %v1983
        %v1988 = vpack.c.bf16 %v1796, %v1794
        %v1989 = vpack.c.bf16 %v1797, %v1795
        %v1990 = vpack.c.bf16 %v1936, %v1934
        %v1991 = vpack.c.bf16 %v1937, %v1935
        %v1992 = vpack.c.bf16 %v1824, %v1822
        %v1993 = vpack.c.bf16 %v1825, %v1823
        %v1994 = vpack.c.bf16 %v1848, %v1846
        %v1995 = vpack.c.bf16 %v1849, %v1847
        %v1996 = vpack.c.bf16 %v1956, %v1954
        %v1997 = vpack.c.bf16 %v1957, %v1955
        %v1998 = vpack.c.bf16 %v1872, %v1870
        %v1999 = vpack.c.bf16 %v1873, %v1871
        %v2000 = vpack.c.bf16 %v1896, %v1894
        %v2001 = vpack.c.bf16 %v1897, %v1895
        %v2002 = vpack.c.bf16 %v1976, %v1974
        %v2003 = vpack.c.bf16 %v1977, %v1975
        %v2004 = vpack.c.bf16 %v1920, %v1918
        %v2005 = vpack.c.bf16 %v1921, %v1919
        %v2006 = vld [vmem:[%s14] sm:$0xff]
        %v2007 = vld [vmem:[%s14 + $0x8] sm:$0xff]
        %2009 = vset.pattern.permute.xlu0 0
        %2010 = vperm.xlu0 %2009, %v2006
        %v2011 = vpop.permute.xlu0 %2010
        %2014 = vset.pattern.permute.xlu0 0
        %2015 = vperm.xlu0 %2014, %v2007
        %v2016 = vpop.permute.xlu0 %2015
        %v2019 = vsel %vm1377, %v1987, 0
        %2021 = vmatprep.subr.bf16.mxu0 %v1989
        %2022 = vmatpush1.bf16.msra.mxu0 %v1988
        %2023 = vmatprep.subr.bf16.mxu0 %v1991
        %2024 = vmatpush1.bf16.msra.mxu0 %v1990
        %2025 = vmatprep.subr.bf16.mxu0 %v1993
        %2026 = vmatpush1.bf16.msra.mxu0 %v1992
        %2027 = vmatprep.subr.bf16.mxu0 %v1995
        %2028 = vmatpush1.bf16.msra.mxu0 %v1994
        %2029 = vmatprep.subr.bf16.mxu0 %v1997
        %2030 = vmatpush1.bf16.msra.mxu0 %v1996
        %2031 = vmatprep.subr.bf16.mxu0 %v1999
        %2032 = vmatpush1.bf16.msra.mxu0 %v1998
        %2033 = vmatprep.subr.bf16.mxu0 %v2001
        %2034 = vmatpush1.bf16.msra.mxu0 %v2000
        %2035 = vmatprep.subr.bf16.mxu0 %v2003
        %2036 = vmatpush1.bf16.msra.mxu0 %v2002
        %2037 = vmatprep.subr.bf16.mxu0 %v2005
        %2038 = vmatpush1.bf16.msra.mxu0 %v2004
        %2039 = vmatprep.subr.bf16.mxu0 0
        %2040 = vmatpush1.bf16.msra.mxu0 0
        %2041 = vmatprep.subr.bf16.mxu0 0
        %2042 = vmatpush1.bf16.msra.mxu0 0
        %2043 = vmatprep.subr.bf16.mxu0 0
        %2044 = vmatpush1.bf16.msra.mxu0 0
        %2045 = vmatprep.subr.bf16.mxu0 0
        %2046 = vmatpush1.bf16.msra.mxu0 0
        %2047 = vmatprep.subr.bf16.mxu0 0
        %2048 = vmatpush1.bf16.msra.mxu0 0
        %2049 = vmatprep.subr.bf16.mxu0 0
        %2050 = vmatpush1.bf16.msra.mxu0 0
        %2051 = vmatprep.subr.bf16.mxu0 0
        %2052 = vmatpush1.bf16.msra.mxu0 0
        %2053 = vmatprep.mubr.bf16.mxu0 %v2019
        %2054 = vmatmul.mubr.bf16.gmra.mrb[0].mxu0 %v1986
        %v2055 = vpop.f32.mrb[0].mxu0
        %v2056 = vadd.f32 %v2011, %v2055
        %v2057 = vpop.f32.mrb[0].mxu0
        %v2058 = vadd.f32 %v2011, %v2057
        %v2059 = vpop.f32.mrb[0].mxu0
        %v2060 = vadd.f32 %v2016, %v2059
        %v2061 = vpop.f32.mrb[0].mxu0
        %v2062 = vadd.f32 %v2016, %v2061
        %2063 = vdwg.mxu0
        %v2064 = vadd.f32 %v1758, %v2056
        %v2065 = vadd.f32 %v1760, %v2058
        %v2066 = vadd.f32 %v1762, %v2060
        %v2067 = vadd.f32 %v1764, %v2062
        %2068 = vst [vmem:[%s565] sm:$0xff] %v2064
        %2069 = vst [vmem:[%s565 + $0x8] sm:$0xff] %v2065
        %2070 = vst [vmem:[%s565 + $0x10] sm:$0xff] %v2066
        %2071 = vst [vmem:[%s565 + $0x18] sm:$0xff] %v2067
        %s2072 = sand.u32 %s367, 1
        %s2073 = scalar_lea.sflag [#allocation4], %s2072
        %s2074 = sand.u32 %s367, 1
        %s2075 = smul.addr %s2074, 32
        %s2076 = scalar_lea.vmem [#allocation10], %s2075
        // Predicated region
        $region97: #{tpu_custom_call.1} parent=79 // pred_check
          %p2077 = pneg %p377
        $region98: #{tpu_custom_call.1} parent=79 // pred_check_branch
          %2079 = sbr.rel (%p2077) target = $region100
        $region99: #{tpu_custom_call.1} parent=79 // pred_region
          %s2081 = ssub.s32 512, 512
          %2082 = vsyncadd %s2073, %s2081
          %s2083 = smul.addr %s34, 4
          %s2084 = smul.addr %s2083, 128
          %s2085 = scalar_lea.hbm %s15, %s2084
          %s2086 = sshll.u32 %s2076, 4
          %s2087 = int_to_ptr.vmem [resolvable:$true] %s2086
          %2092 = dma.vmem_to_hbm [thread:$0]  %s2087, 512, %s2085, %s2073, 256, 256, 16
        $region100: #{tpu_custom_call.1} parent=79 // pred_fallthru
          _
      $region80: #{tpu_custom_call.1} parent=5 // pred_fallthru
        _
      %p2093 = scmp.le.s32.totalorder 2, %s29
      // Predicated region
      $region101: #{tpu_custom_call.1} parent=5 // pred_check
        %p2094 = pneg %p2093
      $region102: #{tpu_custom_call.1} parent=5 // pred_check_branch
        %2096 = sbr.rel (%p2094) target = $region104
      $region103: #{tpu_custom_call.1} parent=5 // pred_region
        %s2097 = ssub.s32 %s29, 2
        // Predicated region
        $region105: #{tpu_custom_call.1} parent=103 // pred_check
          %p2098 = pneg %p383
        $region106: #{tpu_custom_call.1} parent=103 // pred_check_branch
          %2100 = sbr.rel (%p2098) target = $region108
        $region107: #{tpu_custom_call.1} parent=103 // pred_region
          %s2101 = sand.u32 %s368, 1
          %s2102 = scalar_lea.sflag [#allocation4], %s2101
          %s2103 = sand.u32 %s368, 1
          %s2104 = smul.addr %s2103, 32
          %s2105 = scalar_lea.vmem [#allocation10], %s2104
          %2106 = dma.done %s2102, 512
        $region108: #{tpu_custom_call.1} parent=103 // pred_fallthru
          _
      $region104: #{tpu_custom_call.1} parent=5 // pred_fallthru
        _
    $region6: #{tpu_custom_call.1} parent=1 // loop_footer
      %s33 = sadd.s32 1, %s29
    $region7: #{tpu_custom_call.1} parent=1 // loop_footer_branch
      %28 = sbr.rel target = $region3
    $region8: #{tpu_custom_call.1} parent=1 // loop_exit
      _
    %2107 = vsyncpa [#allocation3], 1
    %s2108 = scalar_lea.sflag [#allocation3], 1
    %2109 = vsyncpa %s2108, 1
    %2110 = vsyncpa [#allocation6], 1
    %2111 = vsyncpa [#allocation9], 1
    %2112 = vsyncpa [#allocation4], 1
    %s2113 = scalar_lea.sflag [#allocation4], 1
    %2114 = vsyncpa %s2113, 1

</llo_original>
